<compile_context>
chip_gen: v6e
topology: v6e:2x2x1
jax: 0.10.0
libtpu: 0.0.40
codegen_flags: <defaults>
</compile_context>

<pallas_src>
import functools

import jax
import jax.numpy as jnp
from jax.experimental import pallas as pl
from jax.experimental.pallas import tpu as pltpu

_INNER_MLP_MULT = 2
_BN_EPS = 1e-5


# --------------------------- in-kernel helpers ------------------------------

def _dot(a, b):
    """MXU matmul: bf16 operands, f32 accumulation."""
    return jnp.dot(a.astype(jnp.bfloat16), b.astype(jnp.bfloat16),
                   preferred_element_type=jnp.float32)


def _bn_relu(h, gamma, beta, segs):
    """BatchNorm1d (training mode: batch stats, biased variance) + ReLU (f32).

    segs:
      None                      -> statistics over every row of `h`
      [(mask, 1/n)]             -> statistics over the masked rows only
      [(m0, 1/n0), (m1, 1/n1)]  -> per-segment statistics; each segment's rows
                                   are normalized with their own stats (equal
                                   to calling BatchNorm1d per segment).
    """
    if segs is None:
        mu = jnp.mean(h, axis=0, keepdims=True)
        var = jnp.mean((h - mu) ** 2, axis=0, keepdims=True)
        mu_r, var_r = mu, var
    elif len(segs) == 1:
        mask, inv_n = segs[0]
        mu = jnp.sum(h * mask, axis=0, keepdims=True) * inv_n
        d = (h - mu) * mask
        var = jnp.sum(d * d, axis=0, keepdims=True) * inv_n
        mu_r, var_r = mu, var
    else:
        mu_r, var_r = 0.0, 0.0
        for mask, inv_n in segs:
            mu = jnp.sum(h * mask, axis=0, keepdims=True) * inv_n
            d = (h - mu) * mask
            var = jnp.sum(d * d, axis=0, keepdims=True) * inv_n
            mu_r = mu_r + mask * mu       # row-select this segment's stats
            var_r = var_r + mask * var
    hn = (h - mu_r) * jax.lax.rsqrt(var_r + _BN_EPS)
    return jnp.maximum(hn * gamma + beta, 0.0)


def _mlp2(x, res, eps, w1, g1, b1, w2, g2, b2, segs):
    """Lin(H,2H,F)->BN->ReLU->Lin(2H,H,F)->BN->ReLU on (x + (1+eps)*res)."""
    h0 = x + (1.0 + eps) * res
    h1 = _bn_relu(_dot(h0, w1), g1, b1, segs)
    return _bn_relu(_dot(h1, w2), g2, b2, segs)


# ------------------------------ fused kernel --------------------------------

def _conv_layer_kernel(eps_ref, x_ref, a_g1_ref, inv_g1_ref, a_g2_ref,
                       inv_g2_ref, a_ce_ref, w_h_ref, w_2h_ref, c32_ref,
                       c64_ref, out_ref, *, ne_pad, ne, np_pad, ncs, h):
    n_cyc = len(ncs)
    np2 = n_cyc * np_pad
    h4 = 4 * h

    # ----- static row offsets inside the packed parameter slabs -------------
    EE_LIN, EC_LIN = 0, h4
    CYC_LIN = [(2 + i) * h4 for i in range(n_cyc)]
    W2_BASE = (2 + n_cyc) * h4
    EE_W2, EM_W2, CM_W2, HEAD_W = (W2_BASE, W2_BASE + 2 * h,
                                   W2_BASE + 4 * h, W2_BASE + 6 * h)
    EE_W1, EM_W1, CM_W1 = 0, h, 2 * h
    EE_LIN_B, EE_G2, EE_B2, EC_LIN_B = 0, 1, 2, 3
    CYC_LIN_B = [4 + i for i in range(n_cyc)]
    EM_G2, EM_B2, CM_G2, CM_B2, HD_G, HD_B = (4 + n_cyc, 5 + n_cyc, 6 + n_cyc,
                                              7 + n_cyc, 8 + n_cyc, 9 + n_cyc)
    EE_G1, EE_B1, EM_G1, EM_B1, CM_G1, CM_B1 = 0, 1, 2, 3, 4, 5

    def wh(off, rows):                      # [rows, H] weight block
        return w_h_ref[off:off + rows, :]

    def w2h(off):                           # [H, 2H] weight block
        return w_2h_ref[off:off + h, :]

    def c32(r):                             # [1, H] bias / BN vector
        return c32_ref[r:r + 1, :]

    def c64(r):                             # [1, 2H] BN vector
        return c64_ref[r:r + 1, :]

    # ----- hoisted scalars, masks and BN segments ---------------------------
    eps_ee, eps_edge, eps_cyc = eps_ref[0], eps_ref[1], eps_ref[2]

    if ne == ne_pad:
        segs_e = None
    else:
        eidx = jax.lax.broadcasted_iota(jnp.int32, (ne_pad, 1), 0)
        segs_e = [((eidx < ne).astype(jnp.float32), 1.0 / float(ne))]

    cidx = jax.lax.broadcasted_iota(jnp.int32, (np2, 1), 0)
    segs_c = [(((cidx >= i * np_pad) & (cidx < i * np_pad + ncs[i])
                ).astype(jnp.float32), 1.0 / float(ncs[i]))
              for i in range(n_cyc)]

    edge_rep = x_ref[0:ne_pad, :]                       # [ne_pad, H]
    cyc_stack = x_ref[ne_pad:ne_pad + np2, :]           # [np2, H]

    # ----- gather levels 1 & 2 (edge path + all cycle paths, one stack) -----
    # gather(A, x) = [A@x , inv * (A@x)]  with inv = 1/max(rowsum(A), 1)
    inv_g1 = inv_g1_ref[...]
    inv_g2 = inv_g2_ref[...]
    s1 = _dot(a_g1_ref[...], edge_rep)                  # [ne_pad+np2, H]
    u = _dot(a_g2_ref[...], s1)                         # A2 @ (A1@x)
    v = _dot(a_g2_ref[...], inv_g1 * s1)                # A2 @ (A1n@x)
    g2 = jnp.concatenate([u, v, inv_g2 * u, inv_g2 * v], axis=-1)  # [., 4H]

    # ----- Edge_edge branch --------------------------------------------------
    e2e = _dot(g2[0:ne_pad, :], wh(EE_LIN, h4)) + c32(EE_LIN_B)
    edge_out1 = _mlp2(e2e, edge_rep, eps_ee,
                      w2h(EE_W1), c64(EE_G1), c64(EE_B1),
                      wh(EE_W2, 2 * h), c32(EE_G2), c32(EE_B2), segs_e)

    # ----- Edge_Cycle: per-cycle 4H->H linears on the stacked gather --------
    ts = [_dot(g2[ne_pad + i * np_pad:ne_pad + (i + 1) * np_pad, :],
               wh(CYC_LIN[i], h4)) + c32(CYC_LIN_B[i])
          for i in range(n_cyc)]
    t_stack = jnp.concatenate(ts, axis=0)               # [np2, H]

    # ----- cycles -> edge gather: sum over cycles & exact mean folded into
    #       the [2*ne_pad, np2] matrix (rows 0:ne_pad raw, ne_pad: normalized).
    rt = jnp.dot(a_ce_ref[...], t_stack, preferred_element_type=jnp.float32)
    rc = jnp.dot(a_ce_ref[...], cyc_stack, preferred_element_type=jnp.float32)
    g3 = jnp.concatenate([rt[0:ne_pad], rc[0:ne_pad],
                          rt[ne_pad:], rc[ne_pad:]], axis=-1)      # [ne_pad, 4H]
    cycle2edge = _dot(g3, wh(EC_LIN, h4)) + c32(EC_LIN_B)
    edge_out2 = _mlp2(cycle2edge, edge_rep, eps_edge,
                      w2h(EM_W1), c64(EM_G1), c64(EM_B1),
                      wh(EM_W2, 2 * h), c32(EM_G2), c32(EM_B2), segs_e)

    # ----- ConvLayer head: cat([e1,e2]) @ W  ==  e1 @ W[:H] + e2 @ W[H:] -----
    hh = (_dot(edge_out1, wh(HEAD_W, h))
          + _dot(edge_out2, wh(HEAD_W + h, h)))
    edge_new = _bn_relu(hh, c32(HD_G), c32(HD_B), segs_e)
    out_ref[0:ne_pad, :] = edge_rep + edge_new           # residual in-kernel

    # ----- cycle outputs: both cycles batched, per-cycle BN via segments ----
    co = _mlp2(t_stack, cyc_stack, eps_cyc,
               w2h(CM_W1), c64(CM_G1), c64(CM_B1),
               wh(CM_W2, 2 * h), c32(CM_G2), c32(CM_B2), segs_c)
    out_ref[ne_pad:ne_pad + np2, :] = cyc_stack + co     # residual in-kernel


# ------------------------------- wrapper -------------------------------------

def _round_up(n, m):
    return ((n + m - 1) // m) * m


def _pad2(x, rows, cols):
    return jnp.pad(x, ((0, rows - x.shape[0]), (0, cols - x.shape[1])))


def _norm_inv(a):
    rs = jnp.sum(a, axis=1, keepdims=True)
    return 1.0 / jnp.maximum(rs, 1.0)


def _block_diag(blocks):
    total = sum(b.shape[1] for b in blocks)
    rows, off = [], 0
    for b in blocks:
        rows.append(jnp.pad(b, ((0, 0), (off, total - off - b.shape[1]))))
        off += b.shape[1]
    return jnp.concatenate(rows, axis=0)


def conv_layer_forward(params, edge_rep, cycle_reps, gmats):
    ne, h = edge_rep.shape
    ncs = tuple(int(c.shape[0]) for c in cycle_reps)
    n_cyc = len(cycle_reps)
    ne_pad = _round_up(ne, 8)
    np_pad = _round_up(max(ncs), 8)
    np2 = n_cyc * np_pad
    rows_in = ne_pad + np2

    # ---- data slab: edge rows first, then padded cycle rows -----------------
    x_in = jnp.concatenate([_pad2(edge_rep, ne_pad, h)]
                           + [_pad2(c, np_pad, h) for c in cycle_reps], axis=0)

    # ---- gather matrices (padded, stacked, normalizers precomputed) ---------
    A_ee = _pad2(gmats["A_ee"], ne_pad, ne_pad)
    A_ec = [_pad2(a, np_pad, ne_pad) for a, _, _ in gmats["cycles"]]
    A_cc = [_pad2(a, np_pad, np_pad) for _, a, _ in gmats["cycles"]]
    A_ce = [_pad2(a, ne_pad, np_pad) for _, _, a in gmats["cycles"]]

    a_g1 = jnp.concatenate([A_ee] + A_ec, axis=0)         # [rows_in, ne_pad]
    inv_g1 = _norm_inv(a_g1)                               # exact mean normalizer
    a_g2 = _block_diag([A_ee] + A_cc)                      # [rows_in, rows_in]
    inv_g2 = _norm_inv(a_g2)
    a_ce_raw = jnp.concatenate(A_ce, axis=1)               # [ne_pad, np2]
    a_ce_nrm = jnp.concatenate([a * _norm_inv(a) for a in A_ce], axis=1)
    a_ce_full = jnp.concatenate([a_ce_raw, a_ce_nrm], axis=0)   # [2*ne_pad, np2]

    # 0/1 adjacency stacks in bf16 (exact); normalized matrix stays f32.
    a_g1 = a_g1.astype(jnp.bfloat16)
    a_g2 = a_g2.astype(jnp.bfloat16)

    # ---- packed parameter slabs ---------------------------------------------
    ee, ec, head = params["edge2edge"], params["edge_cycle"], params["mlp"]
    w_h = jnp.concatenate(
        [ee["lin_w"], ec["edge_lin_w"]] + list(ec["cyc_lin_w"])
        + [ee["mlp"]["w2"], ec["edge_mlp"]["w2"], ec["cycle_mlp"]["w2"],
           head["w"]], axis=0)                             # [(2+n_cyc)*4H+8H, H]
    w_2h = jnp.concatenate(
        [ee["mlp"]["w1"], ec["edge_mlp"]["w1"], ec["cycle_mlp"]["w1"]],
        axis=0)                                            # [3H, 2H]
    c32 = jnp.concatenate(
        [ee["lin_b"], ee["mlp"]["g2"], ee["mlp"]["b2"], ec["edge_lin_b"]]
        + list(ec["cyc_lin_b"])
        + [ec["edge_mlp"]["g2"], ec["edge_mlp"]["b2"],
           ec["cycle_mlp"]["g2"], ec["cycle_mlp"]["b2"],
           head["g"], head["b"]], axis=0)                  # [10+n_cyc, H]
    c64 = jnp.concatenate(
        [ee["mlp"]["g1"], ee["mlp"]["b1"],
         ec["edge_mlp"]["g1"], ec["edge_mlp"]["b1"],
         ec["cycle_mlp"]["g1"], ec["cycle_mlp"]["b1"]], axis=0)   # [6, 2H]

    kernel = functools.partial(_conv_layer_kernel, ne_pad=ne_pad, ne=ne,
                               np_pad=np_pad, ncs=ncs, h=h)

    dense_inputs = [x_in, a_g1, inv_g1, a_g2, inv_g2, a_ce_full,
                    w_h, w_2h, c32, c64]
    in_specs = ([pl.BlockSpec(memory_space=pltpu.MemorySpace.SMEM)]
                + [pl.BlockSpec(x.shape, lambda i, n=x.ndim: (0,) * n)
                   for x in dense_inputs])
    out_shape = jax.ShapeDtypeStruct((rows_in, h), jnp.float32)
    out_specs = pl.BlockSpec((rows_in, h), lambda i: (0, 0))

    out = pl.pallas_call(
        kernel,
        grid=(1,),
        in_specs=in_specs,
        out_specs=out_specs,
        out_shape=out_shape,
        compiler_params=pltpu.CompilerParams(
            dimension_semantics=("arbitrary",)),
    )(params["eps"], *dense_inputs)

    edge_new = out[:ne]
    cycle_outs = [out[ne_pad + i * np_pad: ne_pad + i * np_pad + ncs[i]]
                  for i in range(n_cyc)]
    return edge_new, cycle_outs


# ------------------------------ parameters -----------------------------------

def init_params(key, H):
    M = _INNER_MLP_MULT
    ks = iter(jax.random.split(key, 24))

    def w(din, dout):
        return (jax.random.normal(next(ks), (din, dout), jnp.float32)
                / jnp.sqrt(jnp.float32(din)))

    def bn(c):
        return jnp.ones((1, c), jnp.float32), jnp.zeros((1, c), jnp.float32)

    def mlp2():
        g1, b1 = bn(H * M)
        g2, b2 = bn(H)
        return {"w1": w(H, H * M), "g1": g1, "b1": b1,
                "w2": w(H * M, H), "g2": g2, "b2": b2}

    zb = jnp.zeros((1, H), jnp.float32)
    g, b = bn(H)
    # NOTE: ConvLayer.cycle_mlp is defined in __init__ but never used in forward.
    return {
        "mlp": {"w": w(2 * H, H), "g": g, "b": b},
        "edge2edge": {"lin_w": w(4 * H, H), "lin_b": zb, "mlp": mlp2()},
        "edge_cycle": {
            "edge_lin_w": w(4 * H, H), "edge_lin_b": zb,
            "cyc_lin_w": [w(4 * H, H), w(4 * H, H)],
            "cyc_lin_b": [zb, zb],
            "edge_mlp": mlp2(), "cycle_mlp": mlp2(),
        },
        # eps scalars, read from SMEM in-kernel: [ee_eps, edge_eps, cycle_eps]
        "eps": jnp.full((3,), 0.1, jnp.float32),
    }


if __name__ == "__main__":
    H = 32          # hidden_dim
    Ne = 16         # number of edge-ptensor atoms
    Nc = [10, 12]   # atoms of the 5-cycle and 6-cycle layers

    key = jax.random.PRNGKey(0)
    k_e, k_c5, k_c6, k_g, k_p = jax.random.split(key, 5)

    edge_rep = jax.random.normal(k_e, (Ne, H), jnp.float32)
    cycle_reps = [jax.random.normal(k_c5, (Nc[0], H), jnp.float32),
                  jax.random.normal(k_c6, (Nc[1], H), jnp.float32)]

    gk = jax.random.split(k_g, 7)

    def adj(k, shape):
        return (jax.random.uniform(k, shape) < 0.4).astype(jnp.float32)

    gmats = {
        "A_ee": adj(gk[0], (Ne, Ne)),
        "cycles": [
            (adj(gk[1], (Nc[0], Ne)), adj(gk[2], (Nc[0], Nc[0])), adj(gk[3], (Ne, Nc[0]))),
            (adj(gk[4], (Nc[1], Ne)), adj(gk[5], (Nc[1], Nc[1])), adj(gk[6], (Ne, Nc[1]))),
        ],
    }

    params = init_params(k_p, H)

    edge_out, cycle_outs = jax.jit(conv_layer_forward)(
        params, edge_rep, cycle_reps, gmats)
    jax.block_until_ready((edge_out, cycle_outs))

    assert edge_out.shape == (Ne, H)
    assert cycle_outs[0].shape == (Nc[0], H) and cycle_outs[1].shape == (Nc[1], H)
    assert bool(jnp.isfinite(edge_out).all())
    assert bool(jnp.isfinite(cycle_outs[0]).all()) and bool(jnp.isfinite(cycle_outs[1]).all())
    print("KERNEL_OK")
</pallas_src>

<mosaic_0001>
module attributes {stable_mosaic.version = 11 : i64} {
  func.func @_conv_layer_kernel(%arg0: i32, %arg1: memref<3xf32, #tpu.memory_space<smem>>, %arg2: memref<48x32xf32, #tpu.memory_space<vmem>>, %arg3: memref<48x16xbf16, #tpu.memory_space<vmem>>, %arg4: memref<48x1xf32, #tpu.memory_space<vmem>>, %arg5: memref<48x48xbf16, #tpu.memory_space<vmem>>, %arg6: memref<48x1xf32, #tpu.memory_space<vmem>>, %arg7: memref<32x32xf32, #tpu.memory_space<vmem>>, %arg8: memref<768x32xf32, #tpu.memory_space<vmem>>, %arg9: memref<96x64xf32, #tpu.memory_space<vmem>>, %arg10: memref<12x32xf32, #tpu.memory_space<vmem>>, %arg11: memref<6x64xf32, #tpu.memory_space<vmem>>, %arg12: memref<48x32xf32, #tpu.memory_space<vmem>>) attributes {dimension_semantics = [#tpu.dimension_semantics<arbitrary>], iteration_bounds = array<i64: 1>, scalar_prefetch = 0 : i64, scratch_operands = 0 : i64, tpu.core_type = #tpu.core_type<tc>, window_params = [{transform_indices = @transform_0, window_bounds = array<i64: 3>}, {pipeline_mode = #tpu.pipeline_mode<synchronous>, transform_indices = @transform_1, window_bounds = array<i64: 48, 32>}, {pipeline_mode = #tpu.pipeline_mode<synchronous>, transform_indices = @transform_2, window_bounds = array<i64: 48, 16>}, {pipeline_mode = #tpu.pipeline_mode<synchronous>, transform_indices = @transform_3, window_bounds = array<i64: 48, 1>}, {pipeline_mode = #tpu.pipeline_mode<synchronous>, transform_indices = @transform_4, window_bounds = array<i64: 48, 48>}, {pipeline_mode = #tpu.pipeline_mode<synchronous>, transform_indices = @transform_5, window_bounds = array<i64: 48, 1>}, {pipeline_mode = #tpu.pipeline_mode<synchronous>, transform_indices = @transform_6, window_bounds = array<i64: 32, 32>}, {pipeline_mode = #tpu.pipeline_mode<synchronous>, transform_indices = @transform_7, window_bounds = array<i64: 768, 32>}, {pipeline_mode = #tpu.pipeline_mode<synchronous>, transform_indices = @transform_8, window_bounds = array<i64: 96, 64>}, {pipeline_mode = #tpu.pipeline_mode<synchronous>, transform_indices = @transform_9, window_bounds = array<i64: 12, 32>}, {pipeline_mode = #tpu.pipeline_mode<synchronous>, transform_indices = @transform_10, window_bounds = array<i64: 6, 64>}, {pipeline_mode = #tpu.pipeline_mode<synchronous>, transform_indices = @transform_11, window_bounds = array<i64: 48, 32>}]} {
    %c0 = arith.constant 0 : index
    %0 = memref.load %arg1[%c0] : memref<3xf32, #tpu.memory_space<smem>>
    %c1 = arith.constant 1 : index
    %1 = memref.load %arg1[%c1] : memref<3xf32, #tpu.memory_space<smem>>
    %c2 = arith.constant 2 : index
    %2 = memref.load %arg1[%c2] : memref<3xf32, #tpu.memory_space<smem>>
    %3 = tpu.iota {dimensions = array<i32: 0>} : vector<32x1xi32>
    %c0_i32 = arith.constant 0 : i32
    %4 = vector.broadcast %c0_i32 : i32 to vector<32x1xi32>
    %5 = arith.cmpi sge, %3, %4 : vector<32x1xi32>
    %c10_i32 = arith.constant 10 : i32
    %6 = vector.broadcast %c10_i32 : i32 to vector<32x1xi32>
    %7 = arith.cmpi slt, %3, %6 : vector<32x1xi32>
    %8 = arith.andi %5, %7 : vector<32x1xi1>
    %9 = arith.extui %8 : vector<32x1xi1> to vector<32x1xi32>
    %10 = arith.sitofp %9 : vector<32x1xi32> to vector<32x1xf32>
    %c16_i32 = arith.constant 16 : i32
    %11 = vector.broadcast %c16_i32 : i32 to vector<32x1xi32>
    %12 = arith.cmpi sge, %3, %11 : vector<32x1xi32>
    %c28_i32 = arith.constant 28 : i32
    %13 = vector.broadcast %c28_i32 : i32 to vector<32x1xi32>
    %14 = arith.cmpi slt, %3, %13 : vector<32x1xi32>
    %15 = arith.andi %12, %14 : vector<32x1xi1>
    %16 = arith.extui %15 : vector<32x1xi1> to vector<32x1xi32>
    %17 = arith.sitofp %16 : vector<32x1xi32> to vector<32x1xf32>
    %c0_0 = arith.constant 0 : index
    %c0_1 = arith.constant 0 : index
    %18 = vector.load %arg2[%c0_0, %c0_1] : memref<48x32xf32, #tpu.memory_space<vmem>>, vector<16x32xf32>
    %c16 = arith.constant 16 : index
    %c0_2 = arith.constant 0 : index
    %19 = vector.load %arg2[%c16, %c0_2] : memref<48x32xf32, #tpu.memory_space<vmem>>, vector<32x32xf32>
    %c0_3 = arith.constant 0 : index
    %c0_4 = arith.constant 0 : index
    %20 = vector.load %arg4[%c0_3, %c0_4] : memref<48x1xf32, #tpu.memory_space<vmem>>, vector<48x1xf32>
    %c0_5 = arith.constant 0 : index
    %c0_6 = arith.constant 0 : index
    %21 = vector.load %arg6[%c0_5, %c0_6] : memref<48x1xf32, #tpu.memory_space<vmem>>, vector<48x1xf32>
    %c0_7 = arith.constant 0 : index
    %c0_8 = arith.constant 0 : index
    %22 = vector.load %arg3[%c0_7, %c0_8] : memref<48x16xbf16, #tpu.memory_space<vmem>>, vector<48x16xbf16>
    %23 = arith.truncf %18 : vector<16x32xf32> to vector<16x32xbf16>
    %cst = arith.constant dense<0.000000e+00> : vector<48x32xf32>
    %24 = tpu.matmul %22, %23, %cst {dimension_numbers = #tpu.dot_dimension_numbers<[1], [0], [0], [1], [0, 0, 1, 1], [], []>} : vector<48x16xbf16>, vector<16x32xbf16>, vector<48x32xf32> -> vector<48x32xf32>
    %c0_9 = arith.constant 0 : index
    %c0_10 = arith.constant 0 : index
    %25 = vector.load %arg5[%c0_9, %c0_10] : memref<48x48xbf16, #tpu.memory_space<vmem>>, vector<48x48xbf16>
    %26 = arith.truncf %24 : vector<48x32xf32> to vector<48x32xbf16>
    %cst_11 = arith.constant dense<0.000000e+00> : vector<48x32xf32>
    %27 = tpu.matmul %25, %26, %cst_11 {dimension_numbers = #tpu.dot_dimension_numbers<[1], [0], [0], [1], [0, 0, 1, 1], [], []>} : vector<48x48xbf16>, vector<48x32xbf16>, vector<48x32xf32> -> vector<48x32xf32>
    %c0_12 = arith.constant 0 : index
    %c0_13 = arith.constant 0 : index
    %28 = vector.load %arg5[%c0_12, %c0_13] : memref<48x48xbf16, #tpu.memory_space<vmem>>, vector<48x48xbf16>
    %29 = vector.broadcast %20 : vector<48x1xf32> to vector<48x32xf32>
    %30 = arith.mulf %29, %24 : vector<48x32xf32>
    %31 = arith.truncf %30 : vector<48x32xf32> to vector<48x32xbf16>
    %cst_14 = arith.constant dense<0.000000e+00> : vector<48x32xf32>
    %32 = tpu.matmul %28, %31, %cst_14 {dimension_numbers = #tpu.dot_dimension_numbers<[1], [0], [0], [1], [0, 0, 1, 1], [], []>} : vector<48x48xbf16>, vector<48x32xbf16>, vector<48x32xf32> -> vector<48x32xf32>
    %33 = vector.broadcast %21 : vector<48x1xf32> to vector<48x32xf32>
    %34 = arith.mulf %33, %27 : vector<48x32xf32>
    %35 = vector.broadcast %21 : vector<48x1xf32> to vector<48x32xf32>
    %36 = arith.mulf %35, %32 : vector<48x32xf32>
    %37 = tpu.concatenate %27, %32, %34, %36 in 1 : vector<48x32xf32>, vector<48x32xf32>, vector<48x32xf32>, vector<48x32xf32> -> vector<48x128xf32>
    %38 = vector.extract_strided_slice %37 {offsets = [0, 0], sizes = [16, 128], strides = [1, 1]} : vector<48x128xf32> to vector<16x128xf32>
    %c0_15 = arith.constant 0 : index
    %c0_16 = arith.constant 0 : index
    %39 = vector.load %arg8[%c0_15, %c0_16] : memref<768x32xf32, #tpu.memory_space<vmem>>, vector<128x32xf32>
    %40 = arith.truncf %38 : vector<16x128xf32> to vector<16x128xbf16>
    %41 = arith.truncf %39 : vector<128x32xf32> to vector<128x32xbf16>
    %cst_17 = arith.constant dense<0.000000e+00> : vector<16x32xf32>
    %42 = tpu.matmul %40, %41, %cst_17 {dimension_numbers = #tpu.dot_dimension_numbers<[1], [0], [0], [1], [0, 0, 1, 1], [], []>} : vector<16x128xbf16>, vector<128x32xbf16>, vector<16x32xf32> -> vector<16x32xf32>
    %c0_18 = arith.constant 0 : index
    %c0_19 = arith.constant 0 : index
    %43 = vector.load %arg10[%c0_18, %c0_19] : memref<12x32xf32, #tpu.memory_space<vmem>>, vector<1x32xf32>
    %44 = vector.broadcast %43 : vector<1x32xf32> to vector<16x32xf32>
    %45 = arith.addf %42, %44 : vector<16x32xf32>
    %c0_20 = arith.constant 0 : index
    %c0_21 = arith.constant 0 : index
    %46 = vector.load %arg9[%c0_20, %c0_21] : memref<96x64xf32, #tpu.memory_space<vmem>>, vector<32x64xf32>
    %c0_22 = arith.constant 0 : index
    %c0_23 = arith.constant 0 : index
    %47 = vector.load %arg11[%c0_22, %c0_23] : memref<6x64xf32, #tpu.memory_space<vmem>>, vector<1x64xf32>
    %c1_24 = arith.constant 1 : index
    %c0_25 = arith.constant 0 : index
    %48 = vector.load %arg11[%c1_24, %c0_25] : memref<6x64xf32, #tpu.memory_space<vmem>>, vector<1x64xf32>
    %c512 = arith.constant 512 : index
    %c0_26 = arith.constant 0 : index
    %49 = vector.load %arg8[%c512, %c0_26] : memref<768x32xf32, #tpu.memory_space<vmem>>, vector<64x32xf32>
    %c1_27 = arith.constant 1 : index
    %c0_28 = arith.constant 0 : index
    %50 = vector.load %arg10[%c1_27, %c0_28] : memref<12x32xf32, #tpu.memory_space<vmem>>, vector<1x32xf32>
    %c2_29 = arith.constant 2 : index
    %c0_30 = arith.constant 0 : index
    %51 = vector.load %arg10[%c2_29, %c0_30] : memref<12x32xf32, #tpu.memory_space<vmem>>, vector<1x32xf32>
    %cst_31 = arith.constant 1.000000e+00 : f32
    %52 = arith.addf %cst_31, %0 : f32
    %53 = vector.broadcast %52 : f32 to vector<16x32xf32>
    %54 = arith.mulf %53, %18 : vector<16x32xf32>
    %55 = arith.addf %45, %54 : vector<16x32xf32>
    %56 = arith.truncf %55 : vector<16x32xf32> to vector<16x32xbf16>
    %57 = arith.truncf %46 : vector<32x64xf32> to vector<32x64xbf16>
    %cst_32 = arith.constant dense<0.000000e+00> : vector<16x64xf32>
    %58 = tpu.matmul %56, %57, %cst_32 {dimension_numbers = #tpu.dot_dimension_numbers<[1], [0], [0], [1], [0, 0, 1, 1], [], []>} : vector<16x32xbf16>, vector<32x64xbf16>, vector<16x64xf32> -> vector<16x64xf32>
    %cst_33 = arith.constant dense<0.000000e+00> : vector<64xf32>
    %59 = vector.multi_reduction <add>, %58, %cst_33 [0] : vector<16x64xf32> to vector<64xf32>
    %60 = vector.shape_cast %59 : vector<64xf32> to vector<1x64xf32>
    %cst_34 = arith.constant 1.600000e+01 : f32
    %61 = vector.broadcast %cst_34 : f32 to vector<1x64xf32>
    %62 = arith.divf %60, %61 : vector<1x64xf32>
    %63 = vector.broadcast %62 : vector<1x64xf32> to vector<16x64xf32>
    %64 = arith.subf %58, %63 : vector<16x64xf32>
    %65 = arith.mulf %64, %64 : vector<16x64xf32>
    %cst_35 = arith.constant dense<0.000000e+00> : vector<64xf32>
    %66 = vector.multi_reduction <add>, %65, %cst_35 [0] : vector<16x64xf32> to vector<64xf32>
    %67 = vector.shape_cast %66 : vector<64xf32> to vector<1x64xf32>
    %cst_36 = arith.constant 1.600000e+01 : f32
    %68 = vector.broadcast %cst_36 : f32 to vector<1x64xf32>
    %69 = arith.divf %67, %68 : vector<1x64xf32>
    %70 = vector.broadcast %62 : vector<1x64xf32> to vector<16x64xf32>
    %71 = arith.subf %58, %70 : vector<16x64xf32>
    %cst_37 = arith.constant 9.99999974E-6 : f32
    %72 = vector.broadcast %cst_37 : f32 to vector<1x64xf32>
    %73 = arith.addf %69, %72 : vector<1x64xf32>
    %74 = math.rsqrt %73 : vector<1x64xf32>
    %75 = vector.broadcast %74 : vector<1x64xf32> to vector<16x64xf32>
    %76 = arith.mulf %71, %75 : vector<16x64xf32>
    %77 = vector.broadcast %47 : vector<1x64xf32> to vector<16x64xf32>
    %78 = arith.mulf %76, %77 : vector<16x64xf32>
    %79 = vector.broadcast %48 : vector<1x64xf32> to vector<16x64xf32>
    %80 = arith.addf %78, %79 : vector<16x64xf32>
    %cst_38 = arith.constant 0.000000e+00 : f32
    %81 = vector.broadcast %cst_38 : f32 to vector<16x64xf32>
    %82 = arith.maximumf %80, %81 : vector<16x64xf32>
    %83 = arith.truncf %82 : vector<16x64xf32> to vector<16x64xbf16>
    %84 = arith.truncf %49 : vector<64x32xf32> to vector<64x32xbf16>
    %cst_39 = arith.constant dense<0.000000e+00> : vector<16x32xf32>
    %85 = tpu.matmul %83, %84, %cst_39 {dimension_numbers = #tpu.dot_dimension_numbers<[1], [0], [0], [1], [0, 0, 1, 1], [], []>} : vector<16x64xbf16>, vector<64x32xbf16>, vector<16x32xf32> -> vector<16x32xf32>
    %cst_40 = arith.constant dense<0.000000e+00> : vector<32xf32>
    %86 = vector.multi_reduction <add>, %85, %cst_40 [0] : vector<16x32xf32> to vector<32xf32>
    %87 = vector.shape_cast %86 : vector<32xf32> to vector<1x32xf32>
    %cst_41 = arith.constant 1.600000e+01 : f32
    %88 = vector.broadcast %cst_41 : f32 to vector<1x32xf32>
    %89 = arith.divf %87, %88 : vector<1x32xf32>
    %90 = vector.broadcast %89 : vector<1x32xf32> to vector<16x32xf32>
    %91 = arith.subf %85, %90 : vector<16x32xf32>
    %92 = arith.mulf %91, %91 : vector<16x32xf32>
    %cst_42 = arith.constant dense<0.000000e+00> : vector<32xf32>
    %93 = vector.multi_reduction <add>, %92, %cst_42 [0] : vector<16x32xf32> to vector<32xf32>
    %94 = vector.shape_cast %93 : vector<32xf32> to vector<1x32xf32>
    %cst_43 = arith.constant 1.600000e+01 : f32
    %95 = vector.broadcast %cst_43 : f32 to vector<1x32xf32>
    %96 = arith.divf %94, %95 : vector<1x32xf32>
    %97 = vector.broadcast %89 : vector<1x32xf32> to vector<16x32xf32>
    %98 = arith.subf %85, %97 : vector<16x32xf32>
    %cst_44 = arith.constant 9.99999974E-6 : f32
    %99 = vector.broadcast %cst_44 : f32 to vector<1x32xf32>
    %100 = arith.addf %96, %99 : vector<1x32xf32>
    %101 = math.rsqrt %100 : vector<1x32xf32>
    %102 = vector.broadcast %101 : vector<1x32xf32> to vector<16x32xf32>
    %103 = arith.mulf %98, %102 : vector<16x32xf32>
    %104 = vector.broadcast %50 : vector<1x32xf32> to vector<16x32xf32>
    %105 = arith.mulf %103, %104 : vector<16x32xf32>
    %106 = vector.broadcast %51 : vector<1x32xf32> to vector<16x32xf32>
    %107 = arith.addf %105, %106 : vector<16x32xf32>
    %cst_45 = arith.constant 0.000000e+00 : f32
    %108 = vector.broadcast %cst_45 : f32 to vector<16x32xf32>
    %109 = arith.maximumf %107, %108 : vector<16x32xf32>
    %110 = vector.extract_strided_slice %37 {offsets = [16, 0], sizes = [16, 128], strides = [1, 1]} : vector<48x128xf32> to vector<16x128xf32>
    %c256 = arith.constant 256 : index
    %c0_46 = arith.constant 0 : index
    %111 = vector.load %arg8[%c256, %c0_46] : memref<768x32xf32, #tpu.memory_space<vmem>>, vector<128x32xf32>
    %112 = arith.truncf %110 : vector<16x128xf32> to vector<16x128xbf16>
    %113 = arith.truncf %111 : vector<128x32xf32> to vector<128x32xbf16>
    %cst_47 = arith.constant dense<0.000000e+00> : vector<16x32xf32>
    %114 = tpu.matmul %112, %113, %cst_47 {dimension_numbers = #tpu.dot_dimension_numbers<[1], [0], [0], [1], [0, 0, 1, 1], [], []>} : vector<16x128xbf16>, vector<128x32xbf16>, vector<16x32xf32> -> vector<16x32xf32>
    %c4 = arith.constant 4 : index
    %c0_48 = arith.constant 0 : index
    %115 = vector.load %arg10[%c4, %c0_48] : memref<12x32xf32, #tpu.memory_space<vmem>>, vector<1x32xf32>
    %116 = vector.broadcast %115 : vector<1x32xf32> to vector<16x32xf32>
    %117 = arith.addf %114, %116 : vector<16x32xf32>
    %118 = vector.extract_strided_slice %37 {offsets = [32, 0], sizes = [16, 128], strides = [1, 1]} : vector<48x128xf32> to vector<16x128xf32>
    %c384 = arith.constant 384 : index
    %c0_49 = arith.constant 0 : index
    %119 = vector.load %arg8[%c384, %c0_49] : memref<768x32xf32, #tpu.memory_space<vmem>>, vector<128x32xf32>
    %120 = arith.truncf %118 : vector<16x128xf32> to vector<16x128xbf16>
    %121 = arith.truncf %119 : vector<128x32xf32> to vector<128x32xbf16>
    %cst_50 = arith.constant dense<0.000000e+00> : vector<16x32xf32>
    %122 = tpu.matmul %120, %121, %cst_50 {dimension_numbers = #tpu.dot_dimension_numbers<[1], [0], [0], [1], [0, 0, 1, 1], [], []>} : vector<16x128xbf16>, vector<128x32xbf16>, vector<16x32xf32> -> vector<16x32xf32>
    %c5 = arith.constant 5 : index
    %c0_51 = arith.constant 0 : index
    %123 = vector.load %arg10[%c5, %c0_51] : memref<12x32xf32, #tpu.memory_space<vmem>>, vector<1x32xf32>
    %124 = vector.broadcast %123 : vector<1x32xf32> to vector<16x32xf32>
    %125 = arith.addf %122, %124 : vector<16x32xf32>
    %126 = tpu.concatenate %117, %125 in 0 : vector<16x32xf32>, vector<16x32xf32> -> vector<32x32xf32>
    %c0_52 = arith.constant 0 : index
    %c0_53 = arith.constant 0 : index
    %127 = vector.load %arg7[%c0_52, %c0_53] : memref<32x32xf32, #tpu.memory_space<vmem>>, vector<32x32xf32>
    %cst_54 = arith.constant dense<0.000000e+00> : vector<32x32xf32>
    %128 = tpu.matmul %127, %126, %cst_54 {dimension_numbers = #tpu.dot_dimension_numbers<[1], [0], [0], [1], [0, 0, 1, 1], [], []>} : vector<32x32xf32>, vector<32x32xf32>, vector<32x32xf32> -> vector<32x32xf32>
    %c0_55 = arith.constant 0 : index
    %c0_56 = arith.constant 0 : index
    %129 = vector.load %arg7[%c0_55, %c0_56] : memref<32x32xf32, #tpu.memory_space<vmem>>, vector<32x32xf32>
    %cst_57 = arith.constant dense<0.000000e+00> : vector<32x32xf32>
    %130 = tpu.matmul %129, %19, %cst_57 {dimension_numbers = #tpu.dot_dimension_numbers<[1], [0], [0], [1], [0, 0, 1, 1], [], []>} : vector<32x32xf32>, vector<32x32xf32>, vector<32x32xf32> -> vector<32x32xf32>
    %131 = vector.extract_strided_slice %128 {offsets = [0, 0], sizes = [16, 32], strides = [1, 1]} : vector<32x32xf32> to vector<16x32xf32>
    %132 = vector.extract_strided_slice %130 {offsets = [0, 0], sizes = [16, 32], strides = [1, 1]} : vector<32x32xf32> to vector<16x32xf32>
    %133 = vector.extract_strided_slice %128 {offsets = [16, 0], sizes = [16, 32], strides = [1, 1]} : vector<32x32xf32> to vector<16x32xf32>
    %134 = vector.extract_strided_slice %130 {offsets = [16, 0], sizes = [16, 32], strides = [1, 1]} : vector<32x32xf32> to vector<16x32xf32>
    %135 = tpu.concatenate %131, %132, %133, %134 in 1 : vector<16x32xf32>, vector<16x32xf32>, vector<16x32xf32>, vector<16x32xf32> -> vector<16x128xf32>
    %c128 = arith.constant 128 : index
    %c0_58 = arith.constant 0 : index
    %136 = vector.load %arg8[%c128, %c0_58] : memref<768x32xf32, #tpu.memory_space<vmem>>, vector<128x32xf32>
    %137 = arith.truncf %135 : vector<16x128xf32> to vector<16x128xbf16>
    %138 = arith.truncf %136 : vector<128x32xf32> to vector<128x32xbf16>
    %cst_59 = arith.constant dense<0.000000e+00> : vector<16x32xf32>
    %139 = tpu.matmul %137, %138, %cst_59 {dimension_numbers = #tpu.dot_dimension_numbers<[1], [0], [0], [1], [0, 0, 1, 1], [], []>} : vector<16x128xbf16>, vector<128x32xbf16>, vector<16x32xf32> -> vector<16x32xf32>
    %c3 = arith.constant 3 : index
    %c0_60 = arith.constant 0 : index
    %140 = vector.load %arg10[%c3, %c0_60] : memref<12x32xf32, #tpu.memory_space<vmem>>, vector<1x32xf32>
    %141 = vector.broadcast %140 : vector<1x32xf32> to vector<16x32xf32>
    %142 = arith.addf %139, %141 : vector<16x32xf32>
    %c32 = arith.constant 32 : index
    %c0_61 = arith.constant 0 : index
    %143 = vector.load %arg9[%c32, %c0_61] : memref<96x64xf32, #tpu.memory_space<vmem>>, vector<32x64xf32>
    %c2_62 = arith.constant 2 : index
    %c0_63 = arith.constant 0 : index
    %144 = vector.load %arg11[%c2_62, %c0_63] : memref<6x64xf32, #tpu.memory_space<vmem>>, vector<1x64xf32>
    %c3_64 = arith.constant 3 : index
    %c0_65 = arith.constant 0 : index
    %145 = vector.load %arg11[%c3_64, %c0_65] : memref<6x64xf32, #tpu.memory_space<vmem>>, vector<1x64xf32>
    %c576 = arith.constant 576 : index
    %c0_66 = arith.constant 0 : index
    %146 = vector.load %arg8[%c576, %c0_66] : memref<768x32xf32, #tpu.memory_space<vmem>>, vector<64x32xf32>
    %c6 = arith.constant 6 : index
    %c0_67 = arith.constant 0 : index
    %147 = vector.load %arg10[%c6, %c0_67] : memref<12x32xf32, #tpu.memory_space<vmem>>, vector<1x32xf32>
    %c7 = arith.constant 7 : index
    %c0_68 = arith.constant 0 : index
    %148 = vector.load %arg10[%c7, %c0_68] : memref<12x32xf32, #tpu.memory_space<vmem>>, vector<1x32xf32>
    %cst_69 = arith.constant 1.000000e+00 : f32
    %149 = arith.addf %cst_69, %1 : f32
    %150 = vector.broadcast %149 : f32 to vector<16x32xf32>
    %151 = arith.mulf %150, %18 : vector<16x32xf32>
    %152 = arith.addf %142, %151 : vector<16x32xf32>
    %153 = arith.truncf %152 : vector<16x32xf32> to vector<16x32xbf16>
    %154 = arith.truncf %143 : vector<32x64xf32> to vector<32x64xbf16>
    %cst_70 = arith.constant dense<0.000000e+00> : vector<16x64xf32>
    %155 = tpu.matmul %153, %154, %cst_70 {dimension_numbers = #tpu.dot_dimension_numbers<[1], [0], [0], [1], [0, 0, 1, 1], [], []>} : vector<16x32xbf16>, vector<32x64xbf16>, vector<16x64xf32> -> vector<16x64xf32>
    %cst_71 = arith.constant dense<0.000000e+00> : vector<64xf32>
    %156 = vector.multi_reduction <add>, %155, %cst_71 [0] : vector<16x64xf32> to vector<64xf32>
    %157 = vector.shape_cast %156 : vector<64xf32> to vector<1x64xf32>
    %cst_72 = arith.constant 1.600000e+01 : f32
    %158 = vector.broadcast %cst_72 : f32 to vector<1x64xf32>
    %159 = arith.divf %157, %158 : vector<1x64xf32>
    %160 = vector.broadcast %159 : vector<1x64xf32> to vector<16x64xf32>
    %161 = arith.subf %155, %160 : vector<16x64xf32>
    %162 = arith.mulf %161, %161 : vector<16x64xf32>
    %cst_73 = arith.constant dense<0.000000e+00> : vector<64xf32>
    %163 = vector.multi_reduction <add>, %162, %cst_73 [0] : vector<16x64xf32> to vector<64xf32>
    %164 = vector.shape_cast %163 : vector<64xf32> to vector<1x64xf32>
    %cst_74 = arith.constant 1.600000e+01 : f32
    %165 = vector.broadcast %cst_74 : f32 to vector<1x64xf32>
    %166 = arith.divf %164, %165 : vector<1x64xf32>
    %167 = vector.broadcast %159 : vector<1x64xf32> to vector<16x64xf32>
    %168 = arith.subf %155, %167 : vector<16x64xf32>
    %cst_75 = arith.constant 9.99999974E-6 : f32
    %169 = vector.broadcast %cst_75 : f32 to vector<1x64xf32>
    %170 = arith.addf %166, %169 : vector<1x64xf32>
    %171 = math.rsqrt %170 : vector<1x64xf32>
    %172 = vector.broadcast %171 : vector<1x64xf32> to vector<16x64xf32>
    %173 = arith.mulf %168, %172 : vector<16x64xf32>
    %174 = vector.broadcast %144 : vector<1x64xf32> to vector<16x64xf32>
    %175 = arith.mulf %173, %174 : vector<16x64xf32>
    %176 = vector.broadcast %145 : vector<1x64xf32> to vector<16x64xf32>
    %177 = arith.addf %175, %176 : vector<16x64xf32>
    %cst_76 = arith.constant 0.000000e+00 : f32
    %178 = vector.broadcast %cst_76 : f32 to vector<16x64xf32>
    %179 = arith.maximumf %177, %178 : vector<16x64xf32>
    %180 = arith.truncf %179 : vector<16x64xf32> to vector<16x64xbf16>
    %181 = arith.truncf %146 : vector<64x32xf32> to vector<64x32xbf16>
    %cst_77 = arith.constant dense<0.000000e+00> : vector<16x32xf32>
    %182 = tpu.matmul %180, %181, %cst_77 {dimension_numbers = #tpu.dot_dimension_numbers<[1], [0], [0], [1], [0, 0, 1, 1], [], []>} : vector<16x64xbf16>, vector<64x32xbf16>, vector<16x32xf32> -> vector<16x32xf32>
    %cst_78 = arith.constant dense<0.000000e+00> : vector<32xf32>
    %183 = vector.multi_reduction <add>, %182, %cst_78 [0] : vector<16x32xf32> to vector<32xf32>
    %184 = vector.shape_cast %183 : vector<32xf32> to vector<1x32xf32>
    %cst_79 = arith.constant 1.600000e+01 : f32
    %185 = vector.broadcast %cst_79 : f32 to vector<1x32xf32>
    %186 = arith.divf %184, %185 : vector<1x32xf32>
    %187 = vector.broadcast %186 : vector<1x32xf32> to vector<16x32xf32>
    %188 = arith.subf %182, %187 : vector<16x32xf32>
    %189 = arith.mulf %188, %188 : vector<16x32xf32>
    %cst_80 = arith.constant dense<0.000000e+00> : vector<32xf32>
    %190 = vector.multi_reduction <add>, %189, %cst_80 [0] : vector<16x32xf32> to vector<32xf32>
    %191 = vector.shape_cast %190 : vector<32xf32> to vector<1x32xf32>
    %cst_81 = arith.constant 1.600000e+01 : f32
    %192 = vector.broadcast %cst_81 : f32 to vector<1x32xf32>
    %193 = arith.divf %191, %192 : vector<1x32xf32>
    %194 = vector.broadcast %186 : vector<1x32xf32> to vector<16x32xf32>
    %195 = arith.subf %182, %194 : vector<16x32xf32>
    %cst_82 = arith.constant 9.99999974E-6 : f32
    %196 = vector.broadcast %cst_82 : f32 to vector<1x32xf32>
    %197 = arith.addf %193, %196 : vector<1x32xf32>
    %198 = math.rsqrt %197 : vector<1x32xf32>
    %199 = vector.broadcast %198 : vector<1x32xf32> to vector<16x32xf32>
    %200 = arith.mulf %195, %199 : vector<16x32xf32>
    %201 = vector.broadcast %147 : vector<1x32xf32> to vector<16x32xf32>
    %202 = arith.mulf %200, %201 : vector<16x32xf32>
    %203 = vector.broadcast %148 : vector<1x32xf32> to vector<16x32xf32>
    %204 = arith.addf %202, %203 : vector<16x32xf32>
    %cst_83 = arith.constant 0.000000e+00 : f32
    %205 = vector.broadcast %cst_83 : f32 to vector<16x32xf32>
    %206 = arith.maximumf %204, %205 : vector<16x32xf32>
    %c704 = arith.constant 704 : index
    %c0_84 = arith.constant 0 : index
    %207 = vector.load %arg8[%c704, %c0_84] : memref<768x32xf32, #tpu.memory_space<vmem>>, vector<32x32xf32>
    %208 = arith.truncf %109 : vector<16x32xf32> to vector<16x32xbf16>
    %209 = arith.truncf %207 : vector<32x32xf32> to vector<32x32xbf16>
    %cst_85 = arith.constant dense<0.000000e+00> : vector<16x32xf32>
    %210 = tpu.matmul %208, %209, %cst_85 {dimension_numbers = #tpu.dot_dimension_numbers<[1], [0], [0], [1], [0, 0, 1, 1], [], []>} : vector<16x32xbf16>, vector<32x32xbf16>, vector<16x32xf32> -> vector<16x32xf32>
    %c736 = arith.constant 736 : index
    %c0_86 = arith.constant 0 : index
    %211 = vector.load %arg8[%c736, %c0_86] : memref<768x32xf32, #tpu.memory_space<vmem>>, vector<32x32xf32>
    %212 = arith.truncf %206 : vector<16x32xf32> to vector<16x32xbf16>
    %213 = arith.truncf %211 : vector<32x32xf32> to vector<32x32xbf16>
    %cst_87 = arith.constant dense<0.000000e+00> : vector<16x32xf32>
    %214 = tpu.matmul %212, %213, %cst_87 {dimension_numbers = #tpu.dot_dimension_numbers<[1], [0], [0], [1], [0, 0, 1, 1], [], []>} : vector<16x32xbf16>, vector<32x32xbf16>, vector<16x32xf32> -> vector<16x32xf32>
    %215 = arith.addf %210, %214 : vector<16x32xf32>
    %c10 = arith.constant 10 : index
    %c0_88 = arith.constant 0 : index
    %216 = vector.load %arg10[%c10, %c0_88] : memref<12x32xf32, #tpu.memory_space<vmem>>, vector<1x32xf32>
    %c11 = arith.constant 11 : index
    %c0_89 = arith.constant 0 : index
    %217 = vector.load %arg10[%c11, %c0_89] : memref<12x32xf32, #tpu.memory_space<vmem>>, vector<1x32xf32>
    %cst_90 = arith.constant dense<0.000000e+00> : vector<32xf32>
    %218 = vector.multi_reduction <add>, %215, %cst_90 [0] : vector<16x32xf32> to vector<32xf32>
    %219 = vector.shape_cast %218 : vector<32xf32> to vector<1x32xf32>
    %cst_91 = arith.constant 1.600000e+01 : f32
    %220 = vector.broadcast %cst_91 : f32 to vector<1x32xf32>
    %221 = arith.divf %219, %220 : vector<1x32xf32>
    %222 = vector.broadcast %221 : vector<1x32xf32> to vector<16x32xf32>
    %223 = arith.subf %215, %222 : vector<16x32xf32>
    %224 = arith.mulf %223, %223 : vector<16x32xf32>
    %cst_92 = arith.constant dense<0.000000e+00> : vector<32xf32>
    %225 = vector.multi_reduction <add>, %224, %cst_92 [0] : vector<16x32xf32> to vector<32xf32>
    %226 = vector.shape_cast %225 : vector<32xf32> to vector<1x32xf32>
    %cst_93 = arith.constant 1.600000e+01 : f32
    %227 = vector.broadcast %cst_93 : f32 to vector<1x32xf32>
    %228 = arith.divf %226, %227 : vector<1x32xf32>
    %229 = vector.broadcast %221 : vector<1x32xf32> to vector<16x32xf32>
    %230 = arith.subf %215, %229 : vector<16x32xf32>
    %cst_94 = arith.constant 9.99999974E-6 : f32
    %231 = vector.broadcast %cst_94 : f32 to vector<1x32xf32>
    %232 = arith.addf %228, %231 : vector<1x32xf32>
    %233 = math.rsqrt %232 : vector<1x32xf32>
    %234 = vector.broadcast %233 : vector<1x32xf32> to vector<16x32xf32>
    %235 = arith.mulf %230, %234 : vector<16x32xf32>
    %236 = vector.broadcast %216 : vector<1x32xf32> to vector<16x32xf32>
    %237 = arith.mulf %235, %236 : vector<16x32xf32>
    %238 = vector.broadcast %217 : vector<1x32xf32> to vector<16x32xf32>
    %239 = arith.addf %237, %238 : vector<16x32xf32>
    %cst_95 = arith.constant 0.000000e+00 : f32
    %240 = vector.broadcast %cst_95 : f32 to vector<16x32xf32>
    %241 = arith.maximumf %239, %240 : vector<16x32xf32>
    %242 = arith.addf %18, %241 : vector<16x32xf32>
    %c0_96 = arith.constant 0 : index
    %c0_97 = arith.constant 0 : index
    %243 = vector.load %arg12[%c0_96, %c0_97] : memref<48x32xf32, #tpu.memory_space<vmem>>, vector<16x32xf32>
    tpu.vector_store %arg12[%c0_96, %c0_97], %242 {strides = array<i32>} : memref<48x32xf32, #tpu.memory_space<vmem>>, vector<16x32xf32>,
    %c64 = arith.constant 64 : index
    %c0_98 = arith.constant 0 : index
    %244 = vector.load %arg9[%c64, %c0_98] : memref<96x64xf32, #tpu.memory_space<vmem>>, vector<32x64xf32>
    %c4_99 = arith.constant 4 : index
    %c0_100 = arith.constant 0 : index
    %245 = vector.load %arg11[%c4_99, %c0_100] : memref<6x64xf32, #tpu.memory_space<vmem>>, vector<1x64xf32>
    %c5_101 = arith.constant 5 : index
    %c0_102 = arith.constant 0 : index
    %246 = vector.load %arg11[%c5_101, %c0_102] : memref<6x64xf32, #tpu.memory_space<vmem>>, vector<1x64xf32>
    %c640 = arith.constant 640 : index
    %c0_103 = arith.constant 0 : index
    %247 = vector.load %arg8[%c640, %c0_103] : memref<768x32xf32, #tpu.memory_space<vmem>>, vector<64x32xf32>
    %c8 = arith.constant 8 : index
    %c0_104 = arith.constant 0 : index
    %248 = vector.load %arg10[%c8, %c0_104] : memref<12x32xf32, #tpu.memory_space<vmem>>, vector<1x32xf32>
    %c9 = arith.constant 9 : index
    %c0_105 = arith.constant 0 : index
    %249 = vector.load %arg10[%c9, %c0_105] : memref<12x32xf32, #tpu.memory_space<vmem>>, vector<1x32xf32>
    %cst_106 = arith.constant 1.000000e+00 : f32
    %250 = arith.addf %cst_106, %2 : f32
    %251 = vector.broadcast %250 : f32 to vector<32x32xf32>
    %252 = arith.mulf %251, %19 : vector<32x32xf32>
    %253 = arith.addf %126, %252 : vector<32x32xf32>
    %254 = arith.truncf %253 : vector<32x32xf32> to vector<32x32xbf16>
    %255 = arith.truncf %244 : vector<32x64xf32> to vector<32x64xbf16>
    %cst_107 = arith.constant dense<0.000000e+00> : vector<32x64xf32>
    %256 = tpu.matmul %254, %255, %cst_107 {dimension_numbers = #tpu.dot_dimension_numbers<[1], [0], [0], [1], [0, 0, 1, 1], [], []>} : vector<32x32xbf16>, vector<32x64xbf16>, vector<32x64xf32> -> vector<32x64xf32>
    %257 = vector.broadcast %10 : vector<32x1xf32> to vector<32x64xf32>
    %258 = arith.mulf %256, %257 : vector<32x64xf32>
    %cst_108 = arith.constant dense<0.000000e+00> : vector<64xf32>
    %259 = vector.multi_reduction <add>, %258, %cst_108 [0] : vector<32x64xf32> to vector<64xf32>
    %260 = vector.shape_cast %259 : vector<64xf32> to vector<1x64xf32>
    %cst_109 = arith.constant 1.000000e-01 : f32
    %261 = vector.broadcast %cst_109 : f32 to vector<1x64xf32>
    %262 = arith.mulf %260, %261 : vector<1x64xf32>
    %263 = vector.broadcast %262 : vector<1x64xf32> to vector<32x64xf32>
    %264 = arith.subf %256, %263 : vector<32x64xf32>
    %265 = vector.broadcast %10 : vector<32x1xf32> to vector<32x64xf32>
    %266 = arith.mulf %264, %265 : vector<32x64xf32>
    %267 = arith.mulf %266, %266 : vector<32x64xf32>
    %cst_110 = arith.constant dense<0.000000e+00> : vector<64xf32>
    %268 = vector.multi_reduction <add>, %267, %cst_110 [0] : vector<32x64xf32> to vector<64xf32>
    %269 = vector.shape_cast %268 : vector<64xf32> to vector<1x64xf32>
    %cst_111 = arith.constant 1.000000e-01 : f32
    %270 = vector.broadcast %cst_111 : f32 to vector<1x64xf32>
    %271 = arith.mulf %269, %270 : vector<1x64xf32>
    %272 = vector.broadcast %10 : vector<32x1xf32> to vector<32x64xf32>
    %273 = vector.broadcast %262 : vector<1x64xf32> to vector<32x64xf32>
    %274 = arith.mulf %272, %273 : vector<32x64xf32>
    %cst_112 = arith.constant 0.000000e+00 : f32
    %275 = vector.broadcast %cst_112 : f32 to vector<32x64xf32>
    %276 = arith.addf %275, %274 : vector<32x64xf32>
    %277 = vector.broadcast %10 : vector<32x1xf32> to vector<32x64xf32>
    %278 = vector.broadcast %271 : vector<1x64xf32> to vector<32x64xf32>
    %279 = arith.mulf %277, %278 : vector<32x64xf32>
    %cst_113 = arith.constant 0.000000e+00 : f32
    %280 = vector.broadcast %cst_113 : f32 to vector<32x64xf32>
    %281 = arith.addf %280, %279 : vector<32x64xf32>
    %282 = vector.broadcast %17 : vector<32x1xf32> to vector<32x64xf32>
    %283 = arith.mulf %256, %282 : vector<32x64xf32>
    %cst_114 = arith.constant dense<0.000000e+00> : vector<64xf32>
    %284 = vector.multi_reduction <add>, %283, %cst_114 [0] : vector<32x64xf32> to vector<64xf32>
    %285 = vector.shape_cast %284 : vector<64xf32> to vector<1x64xf32>
    %cst_115 = arith.constant 0.0833333358 : f32
    %286 = vector.broadcast %cst_115 : f32 to vector<1x64xf32>
    %287 = arith.mulf %285, %286 : vector<1x64xf32>
    %288 = vector.broadcast %287 : vector<1x64xf32> to vector<32x64xf32>
    %289 = arith.subf %256, %288 : vector<32x64xf32>
    %290 = vector.broadcast %17 : vector<32x1xf32> to vector<32x64xf32>
    %291 = arith.mulf %289, %290 : vector<32x64xf32>
    %292 = arith.mulf %291, %291 : vector<32x64xf32>
    %cst_116 = arith.constant dense<0.000000e+00> : vector<64xf32>
    %293 = vector.multi_reduction <add>, %292, %cst_116 [0] : vector<32x64xf32> to vector<64xf32>
    %294 = vector.shape_cast %293 : vector<64xf32> to vector<1x64xf32>
    %cst_117 = arith.constant 0.0833333358 : f32
    %295 = vector.broadcast %cst_117 : f32 to vector<1x64xf32>
    %296 = arith.mulf %294, %295 : vector<1x64xf32>
    %297 = vector.broadcast %17 : vector<32x1xf32> to vector<32x64xf32>
    %298 = vector.broadcast %287 : vector<1x64xf32> to vector<32x64xf32>
    %299 = arith.mulf %297, %298 : vector<32x64xf32>
    %300 = arith.addf %276, %299 : vector<32x64xf32>
    %301 = vector.broadcast %17 : vector<32x1xf32> to vector<32x64xf32>
    %302 = vector.broadcast %296 : vector<1x64xf32> to vector<32x64xf32>
    %303 = arith.mulf %301, %302 : vector<32x64xf32>
    %304 = arith.addf %281, %303 : vector<32x64xf32>
    %305 = arith.subf %256, %300 : vector<32x64xf32>
    %cst_118 = arith.constant 9.99999974E-6 : f32
    %306 = vector.broadcast %cst_118 : f32 to vector<32x64xf32>
    %307 = arith.addf %304, %306 : vector<32x64xf32>
    %308 = math.rsqrt %307 : vector<32x64xf32>
    %309 = arith.mulf %305, %308 : vector<32x64xf32>
    %310 = vector.broadcast %245 : vector<1x64xf32> to vector<32x64xf32>
    %311 = arith.mulf %309, %310 : vector<32x64xf32>
    %312 = vector.broadcast %246 : vector<1x64xf32> to vector<32x64xf32>
    %313 = arith.addf %311, %312 : vector<32x64xf32>
    %cst_119 = arith.constant 0.000000e+00 : f32
    %314 = vector.broadcast %cst_119 : f32 to vector<32x64xf32>
    %315 = arith.maximumf %313, %314 : vector<32x64xf32>
    %316 = arith.truncf %315 : vector<32x64xf32> to vector<32x64xbf16>
    %317 = arith.truncf %247 : vector<64x32xf32> to vector<64x32xbf16>
    %cst_120 = arith.constant dense<0.000000e+00> : vector<32x32xf32>
    %318 = tpu.matmul %316, %317, %cst_120 {dimension_numbers = #tpu.dot_dimension_numbers<[1], [0], [0], [1], [0, 0, 1, 1], [], []>} : vector<32x64xbf16>, vector<64x32xbf16>, vector<32x32xf32> -> vector<32x32xf32>
    %319 = vector.broadcast %10 : vector<32x1xf32> to vector<32x32xf32>
    %320 = arith.mulf %318, %319 : vector<32x32xf32>
    %cst_121 = arith.constant dense<0.000000e+00> : vector<32xf32>
    %321 = vector.multi_reduction <add>, %320, %cst_121 [0] : vector<32x32xf32> to vector<32xf32>
    %322 = vector.shape_cast %321 : vector<32xf32> to vector<1x32xf32>
    %cst_122 = arith.constant 1.000000e-01 : f32
    %323 = vector.broadcast %cst_122 : f32 to vector<1x32xf32>
    %324 = arith.mulf %322, %323 : vector<1x32xf32>
    %325 = vector.broadcast %324 : vector<1x32xf32> to vector<32x32xf32>
    %326 = arith.subf %318, %325 : vector<32x32xf32>
    %327 = vector.broadcast %10 : vector<32x1xf32> to vector<32x32xf32>
    %328 = arith.mulf %326, %327 : vector<32x32xf32>
    %329 = arith.mulf %328, %328 : vector<32x32xf32>
    %cst_123 = arith.constant dense<0.000000e+00> : vector<32xf32>
    %330 = vector.multi_reduction <add>, %329, %cst_123 [0] : vector<32x32xf32> to vector<32xf32>
    %331 = vector.shape_cast %330 : vector<32xf32> to vector<1x32xf32>
    %cst_124 = arith.constant 1.000000e-01 : f32
    %332 = vector.broadcast %cst_124 : f32 to vector<1x32xf32>
    %333 = arith.mulf %331, %332 : vector<1x32xf32>
    %334 = vector.broadcast %10 : vector<32x1xf32> to vector<32x32xf32>
    %335 = vector.broadcast %324 : vector<1x32xf32> to vector<32x32xf32>
    %336 = arith.mulf %334, %335 : vector<32x32xf32>
    %cst_125 = arith.constant 0.000000e+00 : f32
    %337 = vector.broadcast %cst_125 : f32 to vector<32x32xf32>
    %338 = arith.addf %337, %336 : vector<32x32xf32>
    %339 = vector.broadcast %10 : vector<32x1xf32> to vector<32x32xf32>
    %340 = vector.broadcast %333 : vector<1x32xf32> to vector<32x32xf32>
    %341 = arith.mulf %339, %340 : vector<32x32xf32>
    %cst_126 = arith.constant 0.000000e+00 : f32
    %342 = vector.broadcast %cst_126 : f32 to vector<32x32xf32>
    %343 = arith.addf %342, %341 : vector<32x32xf32>
    %344 = vector.broadcast %17 : vector<32x1xf32> to vector<32x32xf32>
    %345 = arith.mulf %318, %344 : vector<32x32xf32>
    %cst_127 = arith.constant dense<0.000000e+00> : vector<32xf32>
    %346 = vector.multi_reduction <add>, %345, %cst_127 [0] : vector<32x32xf32> to vector<32xf32>
    %347 = vector.shape_cast %346 : vector<32xf32> to vector<1x32xf32>
    %cst_128 = arith.constant 0.0833333358 : f32
    %348 = vector.broadcast %cst_128 : f32 to vector<1x32xf32>
    %349 = arith.mulf %347, %348 : vector<1x32xf32>
    %350 = vector.broadcast %349 : vector<1x32xf32> to vector<32x32xf32>
    %351 = arith.subf %318, %350 : vector<32x32xf32>
    %352 = vector.broadcast %17 : vector<32x1xf32> to vector<32x32xf32>
    %353 = arith.mulf %351, %352 : vector<32x32xf32>
    %354 = arith.mulf %353, %353 : vector<32x32xf32>
    %cst_129 = arith.constant dense<0.000000e+00> : vector<32xf32>
    %355 = vector.multi_reduction <add>, %354, %cst_129 [0] : vector<32x32xf32> to vector<32xf32>
    %356 = vector.shape_cast %355 : vector<32xf32> to vector<1x32xf32>
    %cst_130 = arith.constant 0.0833333358 : f32
    %357 = vector.broadcast %cst_130 : f32 to vector<1x32xf32>
    %358 = arith.mulf %356, %357 : vector<1x32xf32>
    %359 = vector.broadcast %17 : vector<32x1xf32> to vector<32x32xf32>
    %360 = vector.broadcast %349 : vector<1x32xf32> to vector<32x32xf32>
    %361 = arith.mulf %359, %360 : vector<32x32xf32>
    %362 = arith.addf %338, %361 : vector<32x32xf32>
    %363 = vector.broadcast %17 : vector<32x1xf32> to vector<32x32xf32>
    %364 = vector.broadcast %358 : vector<1x32xf32> to vector<32x32xf32>
    %365 = arith.mulf %363, %364 : vector<32x32xf32>
    %366 = arith.addf %343, %365 : vector<32x32xf32>
    %367 = arith.subf %318, %362 : vector<32x32xf32>
    %cst_131 = arith.constant 9.99999974E-6 : f32
    %368 = vector.broadcast %cst_131 : f32 to vector<32x32xf32>
    %369 = arith.addf %366, %368 : vector<32x32xf32>
    %370 = math.rsqrt %369 : vector<32x32xf32>
    %371 = arith.mulf %367, %370 : vector<32x32xf32>
    %372 = vector.broadcast %248 : vector<1x32xf32> to vector<32x32xf32>
    %373 = arith.mulf %371, %372 : vector<32x32xf32>
    %374 = vector.broadcast %249 : vector<1x32xf32> to vector<32x32xf32>
    %375 = arith.addf %373, %374 : vector<32x32xf32>
    %cst_132 = arith.constant 0.000000e+00 : f32
    %376 = vector.broadcast %cst_132 : f32 to vector<32x32xf32>
    %377 = arith.maximumf %375, %376 : vector<32x32xf32>
    %378 = arith.addf %19, %377 : vector<32x32xf32>
    %c16_133 = arith.constant 16 : index
    %c0_134 = arith.constant 0 : index
    %379 = vector.load %arg12[%c16_133, %c0_134] : memref<48x32xf32, #tpu.memory_space<vmem>>, vector<32x32xf32>
    tpu.vector_store %arg12[%c16_133, %c0_134], %378 {strides = array<i32>} : memref<48x32xf32, #tpu.memory_space<vmem>>, vector<32x32xf32>,
    return
  }
  func.func @transform_0(%arg0: i32) -> i32 {
    %c0_i32 = arith.constant 0 : i32
    %c0_i32_0 = arith.constant 0 : i32
    return %c0_i32 : i32
  }
  func.func @transform_1(%arg0: i32) -> (i32, i32) {
    %c0_i32 = arith.constant 0 : i32
    %c0_i32_0 = arith.constant 0 : i32
    %c0_i32_1 = arith.constant 0 : i32
    return %c0_i32, %c0_i32_0 : i32, i32
  }
  func.func @transform_2(%arg0: i32) -> (i32, i32) {
    %c0_i32 = arith.constant 0 : i32
    %c0_i32_0 = arith.constant 0 : i32
    %c0_i32_1 = arith.constant 0 : i32
    return %c0_i32, %c0_i32_0 : i32, i32
  }
  func.func @transform_3(%arg0: i32) -> (i32, i32) {
    %c0_i32 = arith.constant 0 : i32
    %c0_i32_0 = arith.constant 0 : i32
    %c0_i32_1 = arith.constant 0 : i32
    return %c0_i32, %c0_i32_0 : i32, i32
  }
  func.func @transform_4(%arg0: i32) -> (i32, i32) {
    %c0_i32 = arith.constant 0 : i32
    %c0_i32_0 = arith.constant 0 : i32
    %c0_i32_1 = arith.constant 0 : i32
    return %c0_i32, %c0_i32_0 : i32, i32
  }
  func.func @transform_5(%arg0: i32) -> (i32, i32) {
    %c0_i32 = arith.constant 0 : i32
    %c0_i32_0 = arith.constant 0 : i32
    %c0_i32_1 = arith.constant 0 : i32
    return %c0_i32, %c0_i32_0 : i32, i32
  }
  func.func @transform_6(%arg0: i32) -> (i32, i32) {
    %c0_i32 = arith.constant 0 : i32
    %c0_i32_0 = arith.constant 0 : i32
    %c0_i32_1 = arith.constant 0 : i32
    return %c0_i32, %c0_i32_0 : i32, i32
  }
  func.func @transform_7(%arg0: i32) -> (i32, i32) {
    %c0_i32 = arith.constant 0 : i32
    %c0_i32_0 = arith.constant 0 : i32
    %c0_i32_1 = arith.constant 0 : i32
    return %c0_i32, %c0_i32_0 : i32, i32
  }
  func.func @transform_8(%arg0: i32) -> (i32, i32) {
    %c0_i32 = arith.constant 0 : i32
    %c0_i32_0 = arith.constant 0 : i32
    %c0_i32_1 = arith.constant 0 : i32
    return %c0_i32, %c0_i32_0 : i32, i32
  }
  func.func @transform_9(%arg0: i32) -> (i32, i32) {
    %c0_i32 = arith.constant 0 : i32
    %c0_i32_0 = arith.constant 0 : i32
    %c0_i32_1 = arith.constant 0 : i32
    return %c0_i32, %c0_i32_0 : i32, i32
  }
  func.func @transform_10(%arg0: i32) -> (i32, i32) {
    %c0_i32 = arith.constant 0 : i32
    %c0_i32_0 = arith.constant 0 : i32
    %c0_i32_1 = arith.constant 0 : i32
    return %c0_i32, %c0_i32_0 : i32, i32
  }
  func.func @transform_11(%arg0: i32) -> (i32, i32) {
    %c0_i32 = arith.constant 0 : i32
    %c0_i32_0 = arith.constant 0 : i32
    %c0_i32_1 = arith.constant 0 : i32
    return %c0_i32, %c0_i32_0 : i32, i32
  }
}

</mosaic_0001>

<llo_original>
// kernel: conv_layer_forward.1
$region0: #{conv_layer_forward.1}
  #allocation0 [shape = 'u32[]', space=smem, size = 0x4, offset = 0x4, fixed_abs, tag = 'smem constant byte address 0x4 - core index']
  #allocation1 [shape = 'u32[144,128]{1,0:T(1,128)}', space=vmem, size = 0x12000, scoped, tag = 'internal scratch']
  %s0 = inlined_call_operand.vmem [shape: f32[3], index: 0, kind: input, shape index: {}]
  %s1 = inlined_call_operand.vmem [shape: f32[48,32], index: 1, kind: input, shape index: {}]
  %s2 = inlined_call_operand.vmem [shape: bf16[48,16], index: 2, kind: input, shape index: {}]
  %s3 = inlined_call_operand.vmem [shape: f32[48,1], index: 3, kind: input, shape index: {}]
  %s4 = inlined_call_operand.vmem [shape: bf16[48,48], index: 4, kind: input, shape index: {}]
  %s5 = inlined_call_operand.vmem [shape: f32[48,1], index: 5, kind: input, shape index: {}]
  %s6 = inlined_call_operand.vmem [shape: f32[32,32], index: 6, kind: input, shape index: {}]
  %s7 = inlined_call_operand.vmem [shape: f32[768,32], index: 7, kind: input, shape index: {}]
  %s8 = inlined_call_operand.vmem [shape: f32[96,64], index: 8, kind: input, shape index: {}]
  %s9 = inlined_call_operand.vmem [shape: f32[12,32], index: 9, kind: input, shape index: {}]
  %s10 = inlined_call_operand.vmem [shape: f32[6,64], index: 10, kind: input, shape index: {}]
  %s11 = inlined_call_operand.vmem [shape: f32[48,32], index: 11, kind: output, shape index: {}]
  %s12 = sld [smem:[#allocation0]]
  $region58: #{conv_layer_forward.1} parent=0
    _
  %s14 = ssub.s32 1, %s12
  %s15 = scalar_select 0, %s14, %s12
  $region1: #{conv_layer_forward.1} parent=0
    #allocation2 [shape = 'u8[512]{0}', space=smem, size = 0x200, scoped, tag = 'input window, operand 0, single buffered']
    #allocation3 [shape = 's32[1]{0}', space=sflag, size = 0x4, scoped, tag = 'scoped memory for conv_layer_forward.1']
    %16 = vsyncpa [#allocation3], 0
    // Predicated region
    $region2: #{conv_layer_forward.1} parent=1 // pred_check
      _
    $region3: #{conv_layer_forward.1} parent=1 // pred_check_branch
      %18 = sbr.rel (0) target = $region5
    $region4: #{conv_layer_forward.1} parent=1 // pred_region
      %s20 = ssub.s32 16, 16
      %21 = vsyncadd [#allocation3], %s20
      %s23 = sshll.u32 %s0, 4
      %s24 = int_to_ptr.vmem [resolvable:$true] %s23
      %26 = dma.vmem_to_smem %s24, 16, [#allocation2], [#allocation3]
    $region5: #{conv_layer_forward.1} parent=1 // pred_fallthru
      _
    // Predicated region
    $region6: #{conv_layer_forward.1} parent=1 // pred_check
      _
    $region7: #{conv_layer_forward.1} parent=1 // pred_check_branch
      %28 = sbr.rel (0) target = $region9
    $region8: #{conv_layer_forward.1} parent=1 // pred_region
      _
    $region9: #{conv_layer_forward.1} parent=1 // pred_fallthru
      _
    // Predicated region
    $region10: #{conv_layer_forward.1} parent=1 // pred_check
      _
    $region11: #{conv_layer_forward.1} parent=1 // pred_check_branch
      %30 = sbr.rel (0) target = $region13
    $region12: #{conv_layer_forward.1} parent=1 // pred_region
      _
    $region13: #{conv_layer_forward.1} parent=1 // pred_fallthru
      _
    // Predicated region
    $region14: #{conv_layer_forward.1} parent=1 // pred_check
      _
    $region15: #{conv_layer_forward.1} parent=1 // pred_check_branch
      %32 = sbr.rel (0) target = $region17
    $region16: #{conv_layer_forward.1} parent=1 // pred_region
      _
    $region17: #{conv_layer_forward.1} parent=1 // pred_fallthru
      _
    // Predicated region
    $region18: #{conv_layer_forward.1} parent=1 // pred_check
      _
    $region19: #{conv_layer_forward.1} parent=1 // pred_check_branch
      %34 = sbr.rel (0) target = $region21
    $region20: #{conv_layer_forward.1} parent=1 // pred_region
      _
    $region21: #{conv_layer_forward.1} parent=1 // pred_fallthru
      _
    // Predicated region
    $region22: #{conv_layer_forward.1} parent=1 // pred_check
      _
    $region23: #{conv_layer_forward.1} parent=1 // pred_check_branch
      %36 = sbr.rel (0) target = $region25
    $region24: #{conv_layer_forward.1} parent=1 // pred_region
      _
    $region25: #{conv_layer_forward.1} parent=1 // pred_fallthru
      _
    // Predicated region
    $region26: #{conv_layer_forward.1} parent=1 // pred_check
      _
    $region27: #{conv_layer_forward.1} parent=1 // pred_check_branch
      %38 = sbr.rel (0) target = $region29
    $region28: #{conv_layer_forward.1} parent=1 // pred_region
      _
    $region29: #{conv_layer_forward.1} parent=1 // pred_fallthru
      _
    // Predicated region
    $region30: #{conv_layer_forward.1} parent=1 // pred_check
      _
    $region31: #{conv_layer_forward.1} parent=1 // pred_check_branch
      %40 = sbr.rel (0) target = $region33
    $region32: #{conv_layer_forward.1} parent=1 // pred_region
      _
    $region33: #{conv_layer_forward.1} parent=1 // pred_fallthru
      _
    // Predicated region
    $region34: #{conv_layer_forward.1} parent=1 // pred_check
      _
    $region35: #{conv_layer_forward.1} parent=1 // pred_check_branch
      %42 = sbr.rel (0) target = $region37
    $region36: #{conv_layer_forward.1} parent=1 // pred_region
      _
    $region37: #{conv_layer_forward.1} parent=1 // pred_fallthru
      _
    // Predicated region
    $region38: #{conv_layer_forward.1} parent=1 // pred_check
      _
    $region39: #{conv_layer_forward.1} parent=1 // pred_check_branch
      %44 = sbr.rel (0) target = $region41
    $region40: #{conv_layer_forward.1} parent=1 // pred_region
      _
    $region41: #{conv_layer_forward.1} parent=1 // pred_fallthru
      _
    // Predicated region
    $region42: #{conv_layer_forward.1} parent=1 // pred_check
      _
    $region43: #{conv_layer_forward.1} parent=1 // pred_check_branch
      %46 = sbr.rel (0) target = $region45
    $region44: #{conv_layer_forward.1} parent=1 // pred_region
      _
    $region45: #{conv_layer_forward.1} parent=1 // pred_fallthru
      _
    // Predicated region
    $region46: #{conv_layer_forward.1} parent=1 // pred_check
      _
    $region47: #{conv_layer_forward.1} parent=1 // pred_check_branch
      %48 = sbr.rel (0) target = $region49
    $region48: #{conv_layer_forward.1} parent=1 // pred_region
      %49 = dma.done [#allocation3], 16
    $region49: #{conv_layer_forward.1} parent=1 // pred_fallthru
      _
    %50 = sfence
    %s52 = sld [smem:[#allocation2]]
    %s53 = sld [smem:[#allocation2 + $0x1]]
    %s54 = sld [smem:[#allocation2 + $0x2]]
    %v55 = vlaneseq
    %v56 = vshrl.u32 %v55, 7
    %v57 = vadd.s32 %v56, 8
    %v58 = vadd.s32 %v56, 16
    %v59 = vadd.s32 %v56, 24
    %vm60 = vcmp.ge.s32.totalorder %v56, 0
    %vm61 = vcmp.ge.s32.totalorder %v57, 0
    %vm62 = vcmp.ge.s32.totalorder %v58, 0
    %vm63 = vcmp.ge.s32.totalorder %v59, 0
    %vm64 = vcmp.lt.s32.totalorder %v56, 10
    %vm65 = vcmp.lt.s32.totalorder %v57, 10
    %vm66 = vcmp.lt.s32.totalorder %v58, 10
    %vm67 = vcmp.lt.s32.totalorder %v59, 10
    %vm68 = vmand %vm60, %vm64
    %vm69 = vmand %vm61, %vm65
    %vm70 = vmand %vm62, %vm66
    %vm71 = vmand %vm63, %vm67
    %v72 = vsel %vm68, 1, 0
    %v73 = vsel %vm69, 1, 0
    %v74 = vsel %vm70, 1, 0
    %v75 = vsel %vm71, 1, 0
    %v76 = vcvt.s32.f32 %v72
    %v77 = vcvt.s32.f32 %v73
    %v78 = vcvt.s32.f32 %v74
    %v79 = vcvt.s32.f32 %v75
    %vm80 = vcmp.ge.s32.totalorder %v56, 16
    %vm81 = vcmp.ge.s32.totalorder %v57, 16
    %vm82 = vcmp.ge.s32.totalorder %v58, 16
    %vm83 = vcmp.ge.s32.totalorder %v59, 16
    %vm84 = vcmp.lt.s32.totalorder %v56, 28
    %vm85 = vcmp.lt.s32.totalorder %v57, 28
    %vm86 = vcmp.lt.s32.totalorder %v58, 28
    %vm87 = vcmp.lt.s32.totalorder %v59, 28
    %vm88 = vmand %vm80, %vm84
    %vm89 = vmand %vm81, %vm85
    %vm90 = vmand %vm82, %vm86
    %vm91 = vmand %vm83, %vm87
    %v92 = vsel %vm88, 1, 0
    %v93 = vsel %vm89, 1, 0
    %v94 = vsel %vm90, 1, 0
    %v95 = vsel %vm91, 1, 0
    %v96 = vcvt.s32.f32 %v92
    %v97 = vcvt.s32.f32 %v93
    %v98 = vcvt.s32.f32 %v94
    %v99 = vcvt.s32.f32 %v95
    %v100 = vld [vmem:[%s1] sm:$0xff]
    %v101 = vld [vmem:[%s1 + $0x8] sm:$0xff]
    %v102 = vld [vmem:[%s1 + $0x10] sm:$0xff]
    %v103 = vld [vmem:[%s1 + $0x18] sm:$0xff]
    %v104 = vld [vmem:[%s1 + $0x20] sm:$0xff]
    %v105 = vld [vmem:[%s1 + $0x28] sm:$0xff]
    %v106 = vld [vmem:[%s3] sm:$0xff]
    %v107 = vld [vmem:[%s3 + $0x8] sm:$0xff]
    %v108 = vld [vmem:[%s3 + $0x10] sm:$0xff]
    %v109 = vld [vmem:[%s3 + $0x18] sm:$0xff]
    %v110 = vld [vmem:[%s3 + $0x20] sm:$0xff]
    %v111 = vld [vmem:[%s3 + $0x28] sm:$0xff]
    %v112 = vld [vmem:[%s5] sm:$0xff]
    %v113 = vld [vmem:[%s5 + $0x8] sm:$0xff]
    %v114 = vld [vmem:[%s5 + $0x10] sm:$0xff]
    %v115 = vld [vmem:[%s5 + $0x18] sm:$0xff]
    %v116 = vld [vmem:[%s5 + $0x20] sm:$0xff]
    %v117 = vld [vmem:[%s5 + $0x28] sm:$0xff]
    %v118 = vld [vmem:[%s2] sm:$0xf]
    %v119 = vld [vmem:[%s2 + $0x4] sm:$0xf]
    %v120 = vld [vmem:[%s2 + $0x8] sm:$0xf]
    %v121 = vld [vmem:[%s2 + $0xc] sm:$0xf]
    %v122 = vld [vmem:[%s2 + $0x10] sm:$0xf]
    %v123 = vld [vmem:[%s2 + $0x14] sm:$0xf]
    %v124 = vpack.c.bf16 %v101, %v100
    %v131 = vunpack.c.l.b16 %v118
    %v132 = vunpack.c.l.b16 %v119
    %v133 = vunpack.c.l.b16 %v120
    %v134 = vunpack.c.l.b16 %v121
    %v135 = vunpack.c.l.b16 %v122
    %v136 = vunpack.c.l.b16 %v123
    %v137 = vpack.c.b16 %v132, %v131
    %v138 = vpack.c.b16 %v134, %v133
    %v139 = vpack.c.b16 %v136, %v135
    %vm140 = vcmask 130048
    %v142 = vsel %vm140, %v137, 0
    %v145 = vsel %vm140, %v138, 0
    %v148 = vsel %vm140, %v139, 0
    %150 = vmatprep.subr.bf16.mxu0 0
    %151 = vmatpush1.bf16.msra.mxu0 0
    %152 = vmatprep.subr.bf16.mxu0 0
    %153 = vmatpush1.bf16.msra.mxu0 0
    %154 = vmatprep.subr.bf16.mxu0 0
    %155 = vmatpush1.bf16.msra.mxu0 0
    %156 = vmatprep.subr.bf16.mxu0 0
    %157 = vmatpush1.bf16.msra.mxu0 0
    %158 = vmatprep.subr.bf16.mxu0 0
    %159 = vmatpush1.bf16.msra.mxu0 0
    %160 = vmatprep.subr.bf16.mxu0 0
    %161 = vmatpush1.bf16.msra.mxu0 0
    %162 = vmatprep.subr.bf16.mxu0 0
    %163 = vmatpush1.bf16.msra.mxu0 0
    %164 = vmatprep.subr.bf16.mxu0 0
    %165 = vmatpush1.bf16.msra.mxu0 %v124
    %166 = vmatprep.subr.bf16.mxu0 0
    %167 = vmatpush2.bf16.msra.mxu0 0
    %168 = vmatprep.subr.bf16.mxu0 0
    %169 = vmatpush2.bf16.msra.mxu0 0
    %170 = vmatprep.subr.bf16.mxu0 0
    %171 = vmatpush2.bf16.msra.mxu0 0
    %172 = vmatprep.subr.bf16.mxu0 0
    %173 = vmatpush2.bf16.msra.mxu0 0
    %174 = vmatprep.subr.bf16.mxu0 0
    %175 = vmatpush2.bf16.msra.mxu0 0
    %176 = vmatprep.subr.bf16.mxu0 0
    %177 = vmatpush2.bf16.msra.mxu0 0
    %178 = vmatprep.subr.bf16.mxu0 0
    %179 = vmatpush2.bf16.msra.mxu0 0
    %180 = vmatprep.subr.bf16.mxu0 0
    %181 = vmatpush2.bf16.msra.mxu0 0
    %182 = vmatprep.mubr.bf16.mxu0 0
    %183 = vmatmul.mubr.bf16.gmra.mxu0 %v142
    %v184 = vpop.f32.mrf.mxu0
    %v185 = vadd.f32 0.0, %v184
    %v186 = vpop.f32.mrf.mxu0
    %v187 = vpop.f32.mrf.mxu0
    %v188 = vadd.f32 0.0, %v187
    %v189 = vpop.f32.mrf.mxu0
    %190 = vmatprep.mubr.bf16.mxu0 0
    %191 = vmatmul.mubr.bf16.gmra.mxu0 %v145
    %v192 = vpop.f32.mrf.mxu0
    %v193 = vadd.f32 0.0, %v192
    %v194 = vpop.f32.mrf.mxu0
    %v195 = vpop.f32.mrf.mxu0
    %v196 = vadd.f32 0.0, %v195
    %v197 = vpop.f32.mrf.mxu0
    %198 = vmatprep.mubr.bf16.mxu0 0
    %199 = vmatmul.mubr.bf16.gmra.mxu0 %v148
    %v200 = vpop.f32.mrf.mxu0
    %v201 = vadd.f32 0.0, %v200
    %v202 = vpop.f32.mrf.mxu0
    %v203 = vpop.f32.mrf.mxu0
    %v204 = vadd.f32 0.0, %v203
    %v205 = vpop.f32.mrf.mxu0
    %206 = vdwg.mxu0
    %v207 = vld [vmem:[%s4] sm:$0xf]
    %v208 = vld [vmem:[%s4 + $0x4] sm:$0xf]
    %v209 = vld [vmem:[%s4 + $0x8] sm:$0xf]
    %v210 = vld [vmem:[%s4 + $0xc] sm:$0xf]
    %v211 = vld [vmem:[%s4 + $0x10] sm:$0xf]
    %v212 = vld [vmem:[%s4 + $0x14] sm:$0xf]
    %v213 = vpack.c.bf16 %v188, %v185
    %v214 = vpack.c.bf16 %v196, %v193
    %v215 = vpack.c.bf16 %v204, %v201
    %v222 = vunpack.c.l.b16 %v207
    %v223 = vunpack.c.l.b16 %v208
    %v224 = vunpack.c.l.b16 %v209
    %v225 = vunpack.c.l.b16 %v210
    %v226 = vunpack.c.l.b16 %v211
    %v227 = vunpack.c.l.b16 %v212
    %v228 = vpack.c.b16 %v223, %v222
    %v229 = vpack.c.b16 %v225, %v224
    %v230 = vpack.c.b16 %v227, %v226
    %vm231 = vcmask 392192
    %v233 = vsel %vm231, %v228, 0
    %v236 = vsel %vm231, %v229, 0
    %v239 = vsel %vm231, %v230, 0
    %241 = vmatprep.subr.bf16.mxu0 0
    %242 = vmatpush1.bf16.msra.mxu0 0
    %243 = vmatprep.subr.bf16.mxu0 0
    %244 = vmatpush1.bf16.msra.mxu0 0
    %245 = vmatprep.subr.bf16.mxu0 0
    %246 = vmatpush1.bf16.msra.mxu0 0
    %247 = vmatprep.subr.bf16.mxu0 0
    %248 = vmatpush1.bf16.msra.mxu0 0
    %249 = vmatprep.subr.bf16.mxu0 0
    %250 = vmatpush1.bf16.msra.mxu0 0
    %251 = vmatprep.subr.bf16.mxu0 0
    %252 = vmatpush1.bf16.msra.mxu0 %v215
    %253 = vmatprep.subr.bf16.mxu0 0
    %254 = vmatpush1.bf16.msra.mxu0 %v214
    %255 = vmatprep.subr.bf16.mxu0 0
    %256 = vmatpush1.bf16.msra.mxu0 %v213
    %257 = vmatprep.subr.bf16.mxu0 0
    %258 = vmatpush2.bf16.msra.mxu0 0
    %259 = vmatprep.subr.bf16.mxu0 0
    %260 = vmatpush2.bf16.msra.mxu0 0
    %261 = vmatprep.subr.bf16.mxu0 0
    %262 = vmatpush2.bf16.msra.mxu0 0
    %263 = vmatprep.subr.bf16.mxu0 0
    %264 = vmatpush2.bf16.msra.mxu0 0
    %265 = vmatprep.subr.bf16.mxu0 0
    %266 = vmatpush2.bf16.msra.mxu0 0
    %267 = vmatprep.subr.bf16.mxu0 0
    %268 = vmatpush2.bf16.msra.mxu0 0
    %269 = vmatprep.subr.bf16.mxu0 0
    %270 = vmatpush2.bf16.msra.mxu0 0
    %271 = vmatprep.subr.bf16.mxu0 0
    %272 = vmatpush2.bf16.msra.mxu0 0
    %273 = vmatprep.mubr.bf16.mxu0 0
    %274 = vmatmul.mubr.bf16.gmra.mxu0 %v233
    %v275 = vpop.f32.mrf.mxu0
    %v276 = vadd.f32 0.0, %v275
    %v277 = vpop.f32.mrf.mxu0
    %v278 = vpop.f32.mrf.mxu0
    %v279 = vadd.f32 0.0, %v278
    %v280 = vpop.f32.mrf.mxu0
    %281 = vmatprep.mubr.bf16.mxu0 0
    %282 = vmatmul.mubr.bf16.gmra.mxu0 %v236
    %v283 = vpop.f32.mrf.mxu0
    %v284 = vadd.f32 0.0, %v283
    %v285 = vpop.f32.mrf.mxu0
    %v286 = vpop.f32.mrf.mxu0
    %v287 = vadd.f32 0.0, %v286
    %v288 = vpop.f32.mrf.mxu0
    %289 = vmatprep.mubr.bf16.mxu0 0
    %290 = vmatmul.mubr.bf16.gmra.mxu0 %v239
    %v291 = vpop.f32.mrf.mxu0
    %v292 = vadd.f32 0.0, %v291
    %v293 = vpop.f32.mrf.mxu0
    %v294 = vpop.f32.mrf.mxu0
    %v295 = vadd.f32 0.0, %v294
    %v296 = vpop.f32.mrf.mxu0
    %297 = vdwg.mxu0
    %299 = vset.pattern.permute.xlu0 0
    %300 = vperm.xlu0 %299, %v106
    %v301 = vpop.permute.xlu0 %300
    %304 = vset.pattern.permute.xlu0 0
    %305 = vperm.xlu0 %304, %v107
    %v306 = vpop.permute.xlu0 %305
    %309 = vset.pattern.permute.xlu0 0
    %310 = vperm.xlu0 %309, %v108
    %v311 = vpop.permute.xlu0 %310
    %314 = vset.pattern.permute.xlu0 0
    %315 = vperm.xlu0 %314, %v109
    %v316 = vpop.permute.xlu0 %315
    %319 = vset.pattern.permute.xlu0 0
    %320 = vperm.xlu0 %319, %v110
    %v321 = vpop.permute.xlu0 %320
    %324 = vset.pattern.permute.xlu0 0
    %325 = vperm.xlu0 %324, %v111
    %v326 = vpop.permute.xlu0 %325
    %v328 = vmul.f32 %v301, %v185
    %v329 = vmul.f32 %v306, %v188
    %v330 = vmul.f32 %v311, %v193
    %v331 = vmul.f32 %v316, %v196
    %v332 = vmul.f32 %v321, %v201
    %v333 = vmul.f32 %v326, %v204
    %v334 = vpack.c.bf16 %v329, %v328
    %v335 = vpack.c.bf16 %v331, %v330
    %v336 = vpack.c.bf16 %v333, %v332
    %337 = vmatprep.subr.bf16.mxu0 0
    %338 = vmatpush1.bf16.msra.mxu0 0
    %339 = vmatprep.subr.bf16.mxu0 0
    %340 = vmatpush1.bf16.msra.mxu0 0
    %341 = vmatprep.subr.bf16.mxu0 0
    %342 = vmatpush1.bf16.msra.mxu0 0
    %343 = vmatprep.subr.bf16.mxu0 0
    %344 = vmatpush1.bf16.msra.mxu0 0
    %345 = vmatprep.subr.bf16.mxu0 0
    %346 = vmatpush1.bf16.msra.mxu0 0
    %347 = vmatprep.subr.bf16.mxu0 0
    %348 = vmatpush1.bf16.msra.mxu0 %v336
    %349 = vmatprep.subr.bf16.mxu0 0
    %350 = vmatpush1.bf16.msra.mxu0 %v335
    %351 = vmatprep.subr.bf16.mxu0 0
    %352 = vmatpush1.bf16.msra.mxu0 %v334
    %353 = vmatprep.subr.bf16.mxu0 0
    %354 = vmatpush2.bf16.msra.mxu0 0
    %355 = vmatprep.subr.bf16.mxu0 0
    %356 = vmatpush2.bf16.msra.mxu0 0
    %357 = vmatprep.subr.bf16.mxu0 0
    %358 = vmatpush2.bf16.msra.mxu0 0
    %359 = vmatprep.subr.bf16.mxu0 0
    %360 = vmatpush2.bf16.msra.mxu0 0
    %361 = vmatprep.subr.bf16.mxu0 0
    %362 = vmatpush2.bf16.msra.mxu0 0
    %363 = vmatprep.subr.bf16.mxu0 0
    %364 = vmatpush2.bf16.msra.mxu0 0
    %365 = vmatprep.subr.bf16.mxu0 0
    %366 = vmatpush2.bf16.msra.mxu0 0
    %367 = vmatprep.subr.bf16.mxu0 0
    %368 = vmatpush2.bf16.msra.mxu0 0
    %369 = vmatprep.mubr.bf16.mxu0 0
    %370 = vmatmul.mubr.bf16.gmra.mxu0 %v233
    %v371 = vpop.f32.mrf.mxu0
    %v372 = vadd.f32 0.0, %v371
    %v373 = vpop.f32.mrf.mxu0
    %v374 = vpop.f32.mrf.mxu0
    %v375 = vadd.f32 0.0, %v374
    %v376 = vpop.f32.mrf.mxu0
    %377 = vmatprep.mubr.bf16.mxu0 0
    %378 = vmatmul.mubr.bf16.gmra.mxu0 %v236
    %v379 = vpop.f32.mrf.mxu0
    %v380 = vadd.f32 0.0, %v379
    %v381 = vpop.f32.mrf.mxu0
    %v382 = vpop.f32.mrf.mxu0
    %v383 = vadd.f32 0.0, %v382
    %v384 = vpop.f32.mrf.mxu0
    %385 = vmatprep.mubr.bf16.mxu0 0
    %386 = vmatmul.mubr.bf16.gmra.mxu0 %v239
    %v387 = vpop.f32.mrf.mxu0
    %v388 = vadd.f32 0.0, %v387
    %v389 = vpop.f32.mrf.mxu0
    %v390 = vpop.f32.mrf.mxu0
    %v391 = vadd.f32 0.0, %v390
    %v392 = vpop.f32.mrf.mxu0
    %393 = vdwg.mxu0
    %395 = vset.pattern.permute.xlu0 0
    %396 = vperm.xlu0 %395, %v112
    %v397 = vpop.permute.xlu0 %396
    %400 = vset.pattern.permute.xlu0 0
    %401 = vperm.xlu0 %400, %v113
    %v402 = vpop.permute.xlu0 %401
    %405 = vset.pattern.permute.xlu0 0
    %406 = vperm.xlu0 %405, %v114
    %v407 = vpop.permute.xlu0 %406
    %410 = vset.pattern.permute.xlu0 0
    %411 = vperm.xlu0 %410, %v115
    %v412 = vpop.permute.xlu0 %411
    %415 = vset.pattern.permute.xlu0 0
    %416 = vperm.xlu0 %415, %v116
    %v417 = vpop.permute.xlu0 %416
    %420 = vset.pattern.permute.xlu0 0
    %421 = vperm.xlu0 %420, %v117
    %v422 = vpop.permute.xlu0 %421
    %v424 = vmul.f32 %v397, %v276
    %v425 = vmul.f32 %v402, %v279
    %v426 = vmul.f32 %v407, %v284
    %v427 = vmul.f32 %v412, %v287
    %v428 = vmul.f32 %v417, %v292
    %v429 = vmul.f32 %v422, %v295
    %v430 = vmul.f32 %v397, %v372
    %v431 = vmul.f32 %v402, %v375
    %v432 = vmul.f32 %v407, %v380
    %v433 = vmul.f32 %v412, %v383
    %v434 = vmul.f32 %v417, %v388
    %v435 = vmul.f32 %v422, %v391
    %442 = vrot.lane.b32.xlu0 %v372, 32
    %v443 = vpop.permute.xlu0 %442
    %444 = vrot.lane.b32.xlu0 %v375, 32
    %v445 = vpop.permute.xlu0 %444
    %446 = vrot.lane.b32.xlu0 %v380, 32
    %v447 = vpop.permute.xlu0 %446
    %448 = vrot.lane.b32.xlu0 %v383, 32
    %v449 = vpop.permute.xlu0 %448
    %450 = vrot.lane.b32.xlu0 %v388, 32
    %v451 = vpop.permute.xlu0 %450
    %452 = vrot.lane.b32.xlu0 %v391, 32
    %v453 = vpop.permute.xlu0 %452
    %466 = vrot.lane.b32.xlu0 %v424, 64
    %v467 = vpop.permute.xlu0 %466
    %468 = vrot.lane.b32.xlu0 %v425, 64
    %v469 = vpop.permute.xlu0 %468
    %470 = vrot.lane.b32.xlu0 %v426, 64
    %v471 = vpop.permute.xlu0 %470
    %472 = vrot.lane.b32.xlu0 %v427, 64
    %v473 = vpop.permute.xlu0 %472
    %474 = vrot.lane.b32.xlu0 %v428, 64
    %v475 = vpop.permute.xlu0 %474
    %476 = vrot.lane.b32.xlu0 %v429, 64
    %v477 = vpop.permute.xlu0 %476
    %490 = vrot.lane.b32.xlu0 %v430, 96
    %v491 = vpop.permute.xlu0 %490
    %492 = vrot.lane.b32.xlu0 %v431, 96
    %v493 = vpop.permute.xlu0 %492
    %494 = vrot.lane.b32.xlu0 %v432, 96
    %v495 = vpop.permute.xlu0 %494
    %496 = vrot.lane.b32.xlu0 %v433, 96
    %v497 = vpop.permute.xlu0 %496
    %498 = vrot.lane.b32.xlu0 %v434, 96
    %v499 = vpop.permute.xlu0 %498
    %500 = vrot.lane.b32.xlu0 %v435, 96
    %v501 = vpop.permute.xlu0 %500
    %vm508 = vcmask 261120
    %v509 = vsel %vm508, %v276, %v443
    %v510 = vsel %vm508, %v279, %v445
    %v511 = vsel %vm508, %v284, %v447
    %v512 = vsel %vm508, %v287, %v449
    %v513 = vsel %vm508, %v292, %v451
    %v514 = vsel %vm508, %v295, %v453
    %vm515 = vcmask 523264
    %v516 = vsel %vm515, %v509, %v467
    %v517 = vsel %vm515, %v510, %v469
    %v518 = vsel %vm515, %v511, %v471
    %v519 = vsel %vm515, %v512, %v473
    %v520 = vsel %vm515, %v513, %v475
    %v521 = vsel %vm515, %v514, %v477
    %vm522 = vcmask 785408
    %v523 = vsel %vm522, %v516, %v491
    %v524 = vsel %vm522, %v517, %v493
    %v525 = vsel %vm522, %v518, %v495
    %v526 = vsel %vm522, %v519, %v497
    %v527 = vsel %vm522, %v520, %v499
    %v528 = vsel %vm522, %v521, %v501
    %v529 = vld [vmem:[%s7] sm:$0xff]
    %v530 = vld [vmem:[%s7 + $0x8] sm:$0xff]
    %v531 = vld [vmem:[%s7 + $0x10] sm:$0xff]
    %v532 = vld [vmem:[%s7 + $0x18] sm:$0xff]
    %v533 = vld [vmem:[%s7 + $0x20] sm:$0xff]
    %v534 = vld [vmem:[%s7 + $0x28] sm:$0xff]
    %v535 = vld [vmem:[%s7 + $0x30] sm:$0xff]
    %v536 = vld [vmem:[%s7 + $0x38] sm:$0xff]
    %v537 = vld [vmem:[%s7 + $0x40] sm:$0xff]
    %v538 = vld [vmem:[%s7 + $0x48] sm:$0xff]
    %v539 = vld [vmem:[%s7 + $0x50] sm:$0xff]
    %v540 = vld [vmem:[%s7 + $0x58] sm:$0xff]
    %v541 = vld [vmem:[%s7 + $0x60] sm:$0xff]
    %v542 = vld [vmem:[%s7 + $0x68] sm:$0xff]
    %v543 = vld [vmem:[%s7 + $0x70] sm:$0xff]
    %v544 = vld [vmem:[%s7 + $0x78] sm:$0xff]
    %v545 = vpack.c.bf16 %v524, %v523
    %v546 = vpack.c.bf16 %v530, %v529
    %v547 = vpack.c.bf16 %v532, %v531
    %v548 = vpack.c.bf16 %v534, %v533
    %v549 = vpack.c.bf16 %v536, %v535
    %v550 = vpack.c.bf16 %v538, %v537
    %v551 = vpack.c.bf16 %v540, %v539
    %v552 = vpack.c.bf16 %v542, %v541
    %v553 = vpack.c.bf16 %v544, %v543
    %v554 = vld [vmem:[%s9] sm:$0x1]
    %v555 = vlaneseq
    %v556 = vshrl.u32 %v555, 7
    %v557 = vsub.s32 0, %v556
    %v558 = vrot.slane %v554, %v557
    %559 = vmatprep.subr.bf16.mxu0 0
    %560 = vmatpush1.bf16.msra.mxu0 %v553
    %561 = vmatprep.subr.bf16.mxu0 0
    %562 = vmatpush1.bf16.msra.mxu0 %v552
    %563 = vmatprep.subr.bf16.mxu0 0
    %564 = vmatpush1.bf16.msra.mxu0 %v551
    %565 = vmatprep.subr.bf16.mxu0 0
    %566 = vmatpush1.bf16.msra.mxu0 %v550
    %567 = vmatprep.subr.bf16.mxu0 0
    %568 = vmatpush1.bf16.msra.mxu0 %v549
    %569 = vmatprep.subr.bf16.mxu0 0
    %570 = vmatpush1.bf16.msra.mxu0 %v548
    %571 = vmatprep.subr.bf16.mxu0 0
    %572 = vmatpush1.bf16.msra.mxu0 %v547
    %573 = vmatprep.subr.bf16.mxu0 0
    %574 = vmatpush1.bf16.msra.mxu0 %v546
    %575 = vmatprep.subr.bf16.mxu0 0
    %576 = vmatpush2.bf16.msra.mxu0 0
    %577 = vmatprep.subr.bf16.mxu0 0
    %578 = vmatpush2.bf16.msra.mxu0 0
    %579 = vmatprep.subr.bf16.mxu0 0
    %580 = vmatpush2.bf16.msra.mxu0 0
    %581 = vmatprep.subr.bf16.mxu0 0
    %582 = vmatpush2.bf16.msra.mxu0 0
    %583 = vmatprep.subr.bf16.mxu0 0
    %584 = vmatpush2.bf16.msra.mxu0 0
    %585 = vmatprep.subr.bf16.mxu0 0
    %586 = vmatpush2.bf16.msra.mxu0 0
    %587 = vmatprep.subr.bf16.mxu0 0
    %588 = vmatpush2.bf16.msra.mxu0 0
    %589 = vmatprep.subr.bf16.mxu0 0
    %590 = vmatpush2.bf16.msra.mxu0 0
    %591 = vmatprep.mubr.bf16.mxu0 0
    %592 = vmatmul.mubr.bf16.gmra.mxu0 %v545
    %v593 = vpop.f32.mrf.mxu0
    %v594 = vadd.f32 %v558, %v593
    %v595 = vpop.f32.mrf.mxu0
    %v596 = vpop.f32.mrf.mxu0
    %v597 = vadd.f32 %v558, %v596
    %v598 = vpop.f32.mrf.mxu0
    %599 = vdwg.mxu0
    %v600 = vld [vmem:[%s8] sm:$0xff]
    %v601 = vld [vmem:[%s8 + $0x8] sm:$0xff]
    %v602 = vld [vmem:[%s8 + $0x10] sm:$0xff]
    %v603 = vld [vmem:[%s8 + $0x18] sm:$0xff]
    %v604 = vld [vmem:[%s10] sm:$0x1]
    %v605 = vld [vmem:[%s10 + $0x1] sm:$0x1]
    %v606 = vld [vmem:[%s7 + $0x200] sm:$0xff]
    %v607 = vld [vmem:[%s7 + $0x208] sm:$0xff]
    %v608 = vld [vmem:[%s7 + $0x210] sm:$0xff]
    %v609 = vld [vmem:[%s7 + $0x218] sm:$0xff]
    %v610 = vld [vmem:[%s7 + $0x220] sm:$0xff]
    %v611 = vld [vmem:[%s7 + $0x228] sm:$0xff]
    %v612 = vld [vmem:[%s7 + $0x230] sm:$0xff]
    %v613 = vld [vmem:[%s7 + $0x238] sm:$0xff]
    %v614 = vld [vmem:[%s9 + $0x1] sm:$0x1]
    %v615 = vld [vmem:[%s9 + $0x2] sm:$0x1]
    %s616 = sadd.f32 %s52, 1.0
    %v617 = vstv %s616
    %v618 = vmul.f32 %v617, %v100
    %v619 = vmul.f32 %v617, %v101
    %v620 = vadd.f32 %v594, %v618
    %v621 = vadd.f32 %v597, %v619
    %v622 = vpack.c.bf16 %v621, %v620
    %v623 = vpack.c.bf16 %v601, %v600
    %v624 = vpack.c.bf16 %v603, %v602
    %v626 = vsel %vm508, %v622, 0
    %628 = vmatprep.subr.bf16.mxu0 0
    %629 = vmatpush1.bf16.msra.mxu0 0
    %630 = vmatprep.subr.bf16.mxu0 0
    %631 = vmatpush1.bf16.msra.mxu0 0
    %632 = vmatprep.subr.bf16.mxu0 0
    %633 = vmatpush1.bf16.msra.mxu0 0
    %634 = vmatprep.subr.bf16.mxu0 0
    %635 = vmatpush1.bf16.msra.mxu0 0
    %636 = vmatprep.subr.bf16.mxu0 0
    %637 = vmatpush1.bf16.msra.mxu0 0
    %638 = vmatprep.subr.bf16.mxu0 0
    %639 = vmatpush1.bf16.msra.mxu0 0
    %640 = vmatprep.subr.bf16.mxu0 0
    %641 = vmatpush1.bf16.msra.mxu0 %v624
    %642 = vmatprep.subr.bf16.mxu0 0
    %643 = vmatpush1.bf16.msra.mxu0 %v623
    %644 = vmatprep.subr.bf16.mxu0 0
    %645 = vmatpush2.bf16.msra.mxu0 0
    %646 = vmatprep.subr.bf16.mxu0 0
    %647 = vmatpush2.bf16.msra.mxu0 0
    %648 = vmatprep.subr.bf16.mxu0 0
    %649 = vmatpush2.bf16.msra.mxu0 0
    %650 = vmatprep.subr.bf16.mxu0 0
    %651 = vmatpush2.bf16.msra.mxu0 0
    %652 = vmatprep.subr.bf16.mxu0 0
    %653 = vmatpush2.bf16.msra.mxu0 0
    %654 = vmatprep.subr.bf16.mxu0 0
    %655 = vmatpush2.bf16.msra.mxu0 0
    %656 = vmatprep.subr.bf16.mxu0 0
    %657 = vmatpush2.bf16.msra.mxu0 0
    %658 = vmatprep.subr.bf16.mxu0 0
    %659 = vmatpush2.bf16.msra.mxu0 0
    %660 = vmatprep.mubr.bf16.mxu0 0
    %661 = vmatmul.mubr.bf16.gmra.mxu0 %v626
    %v662 = vpop.f32.mrf.mxu0
    %v663 = vadd.f32 0.0, %v662
    %v664 = vpop.f32.mrf.mxu0
    %v665 = vpop.f32.mrf.mxu0
    %v666 = vadd.f32 0.0, %v665
    %v667 = vpop.f32.mrf.mxu0
    %668 = vdwg.mxu0
    %v669 = vsel %vm515, %v663, 0.0
    %v670 = vsel %vm515, %v666, 0.0
    %v671 = vadd.f32 %v669, %v670
    %v672 = vrot.slane %v671, 4
    %v673 = vadd.f32 %v671, %v672
    %v674 = vrot.slane %v673, 2
    %v675 = vadd.f32 %v673, %v674
    %v676 = vrot.slane %v675, 1
    %v677 = vadd.f32 %v675, %v676
    %v678 = vrcp.pop 16.0
    %v679 = vmul.f32 %v677, %v678
    %v680 = vsub.f32 %v663, %v679
    %v681 = vsub.f32 %v666, %v679
    %v682 = vmul.f32 %v680, %v680
    %v683 = vmul.f32 %v681, %v681
    %v684 = vsel %vm515, %v682, 0.0
    %v685 = vsel %vm515, %v683, 0.0
    %v686 = vadd.f32 %v684, %v685
    %v687 = vrot.slane %v686, 4
    %v688 = vadd.f32 %v686, %v687
    %v689 = vrot.slane %v688, 2
    %v690 = vadd.f32 %v688, %v689
    %v691 = vrot.slane %v690, 1
    %v692 = vadd.f32 %v690, %v691
    %v693 = vmul.f32 %v692, %v678
    %v694 = vadd.f32 %v693, 1e-05
    %v695 = vrsqrt.pop %v694
    %v696 = vmul.f32 %v680, %v695
    %v697 = vmul.f32 %v681, %v695
    %v698 = vlaneseq
    %v699 = vshrl.u32 %v698, 7
    %v700 = vsub.s32 0, %v699
    %v701 = vrot.slane %v604, %v700
    %v702 = vmul.f32 %v696, %v701
    %v703 = vmul.f32 %v697, %v701
    %v704 = vlaneseq
    %v705 = vshrl.u32 %v704, 7
    %v706 = vsub.s32 0, %v705
    %v707 = vrot.slane %v605, %v706
    %v708 = vadd.f32 %v702, %v707
    %v709 = vadd.f32 %v703, %v707
    %v710 = vmax.f32 %v708, 0.0
    %v711 = vmax.f32 %v709, 0.0
    %v712 = vpack.c.bf16 %v711, %v710
    %v713 = vpack.c.bf16 %v607, %v606
    %v714 = vpack.c.bf16 %v609, %v608
    %v715 = vpack.c.bf16 %v611, %v610
    %v716 = vpack.c.bf16 %v613, %v612
    %v718 = vsel %vm515, %v712, 0
    %720 = vmatprep.subr.bf16.mxu0 0
    %721 = vmatpush1.bf16.msra.mxu0 0
    %722 = vmatprep.subr.bf16.mxu0 0
    %723 = vmatpush1.bf16.msra.mxu0 0
    %724 = vmatprep.subr.bf16.mxu0 0
    %725 = vmatpush1.bf16.msra.mxu0 0
    %726 = vmatprep.subr.bf16.mxu0 0
    %727 = vmatpush1.bf16.msra.mxu0 0
    %728 = vmatprep.subr.bf16.mxu0 0
    %729 = vmatpush1.bf16.msra.mxu0 %v716
    %730 = vmatprep.subr.bf16.mxu0 0
    %731 = vmatpush1.bf16.msra.mxu0 %v715
    %732 = vmatprep.subr.bf16.mxu0 0
    %733 = vmatpush1.bf16.msra.mxu0 %v714
    %734 = vmatprep.subr.bf16.mxu0 0
    %735 = vmatpush1.bf16.msra.mxu0 %v713
    %736 = vmatprep.subr.bf16.mxu0 0
    %737 = vmatpush2.bf16.msra.mxu0 0
    %738 = vmatprep.subr.bf16.mxu0 0
    %739 = vmatpush2.bf16.msra.mxu0 0
    %740 = vmatprep.subr.bf16.mxu0 0
    %741 = vmatpush2.bf16.msra.mxu0 0
    %742 = vmatprep.subr.bf16.mxu0 0
    %743 = vmatpush2.bf16.msra.mxu0 0
    %744 = vmatprep.subr.bf16.mxu0 0
    %745 = vmatpush2.bf16.msra.mxu0 0
    %746 = vmatprep.subr.bf16.mxu0 0
    %747 = vmatpush2.bf16.msra.mxu0 0
    %748 = vmatprep.subr.bf16.mxu0 0
    %749 = vmatpush2.bf16.msra.mxu0 0
    %750 = vmatprep.subr.bf16.mxu0 0
    %751 = vmatpush2.bf16.msra.mxu0 0
    %752 = vmatprep.mubr.bf16.mxu0 0
    %753 = vmatmul.mubr.bf16.gmra.mxu0 %v718
    %v754 = vpop.f32.mrf.mxu0
    %v755 = vadd.f32 0.0, %v754
    %v756 = vpop.f32.mrf.mxu0
    %v757 = vpop.f32.mrf.mxu0
    %v758 = vadd.f32 0.0, %v757
    %v759 = vpop.f32.mrf.mxu0
    %760 = vdwg.mxu0
    %v761 = vsel %vm508, %v755, 0.0
    %v762 = vsel %vm508, %v758, 0.0
    %v763 = vadd.f32 %v761, %v762
    %v764 = vrot.slane %v763, 4
    %v765 = vadd.f32 %v763, %v764
    %v766 = vrot.slane %v765, 2
    %v767 = vadd.f32 %v765, %v766
    %v768 = vrot.slane %v767, 1
    %v769 = vadd.f32 %v767, %v768
    %v770 = vmul.f32 %v769, %v678
    %v771 = vsub.f32 %v755, %v770
    %v772 = vsub.f32 %v758, %v770
    %v773 = vmul.f32 %v771, %v771
    %v774 = vmul.f32 %v772, %v772
    %v775 = vsel %vm508, %v773, 0.0
    %v776 = vsel %vm508, %v774, 0.0
    %v777 = vadd.f32 %v775, %v776
    %v778 = vrot.slane %v777, 4
    %v779 = vadd.f32 %v777, %v778
    %v780 = vrot.slane %v779, 2
    %v781 = vadd.f32 %v779, %v780
    %v782 = vrot.slane %v781, 1
    %v783 = vadd.f32 %v781, %v782
    %v784 = vmul.f32 %v783, %v678
    %v785 = vadd.f32 %v784, 1e-05
    %v786 = vrsqrt.pop %v785
    %v787 = vmul.f32 %v771, %v786
    %v788 = vmul.f32 %v772, %v786
    %v789 = vlaneseq
    %v790 = vshrl.u32 %v789, 7
    %v791 = vsub.s32 0, %v790
    %v792 = vrot.slane %v614, %v791
    %v793 = vmul.f32 %v787, %v792
    %v794 = vmul.f32 %v788, %v792
    %v795 = vlaneseq
    %v796 = vshrl.u32 %v795, 7
    %v797 = vsub.s32 0, %v796
    %v798 = vrot.slane %v615, %v797
    %v799 = vadd.f32 %v793, %v798
    %v800 = vadd.f32 %v794, %v798
    %v801 = vmax.f32 %v799, 0.0
    %v802 = vmax.f32 %v800, 0.0
    %v803 = vld [vmem:[%s7 + $0x100] sm:$0xff]
    %v804 = vld [vmem:[%s7 + $0x108] sm:$0xff]
    %v805 = vld [vmem:[%s7 + $0x110] sm:$0xff]
    %v806 = vld [vmem:[%s7 + $0x118] sm:$0xff]
    %v807 = vld [vmem:[%s7 + $0x120] sm:$0xff]
    %v808 = vld [vmem:[%s7 + $0x128] sm:$0xff]
    %v809 = vld [vmem:[%s7 + $0x130] sm:$0xff]
    %v810 = vld [vmem:[%s7 + $0x138] sm:$0xff]
    %v811 = vld [vmem:[%s7 + $0x140] sm:$0xff]
    %v812 = vld [vmem:[%s7 + $0x148] sm:$0xff]
    %v813 = vld [vmem:[%s7 + $0x150] sm:$0xff]
    %v814 = vld [vmem:[%s7 + $0x158] sm:$0xff]
    %v815 = vld [vmem:[%s7 + $0x160] sm:$0xff]
    %v816 = vld [vmem:[%s7 + $0x168] sm:$0xff]
    %v817 = vld [vmem:[%s7 + $0x170] sm:$0xff]
    %v818 = vld [vmem:[%s7 + $0x178] sm:$0xff]
    %v819 = vpack.c.bf16 %v526, %v525
    %v820 = vpack.c.bf16 %v804, %v803
    %v821 = vpack.c.bf16 %v806, %v805
    %v822 = vpack.c.bf16 %v808, %v807
    %v823 = vpack.c.bf16 %v810, %v809
    %v824 = vpack.c.bf16 %v812, %v811
    %v825 = vpack.c.bf16 %v814, %v813
    %v826 = vpack.c.bf16 %v816, %v815
    %v827 = vpack.c.bf16 %v818, %v817
    %v828 = vld [vmem:[%s9 + $0x4] sm:$0x1]
    %v829 = vlaneseq
    %v830 = vshrl.u32 %v829, 7
    %v831 = vsub.s32 0, %v830
    %v832 = vrot.slane %v828, %v831
    %833 = vmatprep.subr.bf16.mxu0 0
    %834 = vmatpush1.bf16.msra.mxu0 %v827
    %835 = vmatprep.subr.bf16.mxu0 0
    %836 = vmatpush1.bf16.msra.mxu0 %v826
    %837 = vmatprep.subr.bf16.mxu0 0
    %838 = vmatpush1.bf16.msra.mxu0 %v825
    %839 = vmatprep.subr.bf16.mxu0 0
    %840 = vmatpush1.bf16.msra.mxu0 %v824
    %841 = vmatprep.subr.bf16.mxu0 0
    %842 = vmatpush1.bf16.msra.mxu0 %v823
    %843 = vmatprep.subr.bf16.mxu0 0
    %844 = vmatpush1.bf16.msra.mxu0 %v822
    %845 = vmatprep.subr.bf16.mxu0 0
    %846 = vmatpush1.bf16.msra.mxu0 %v821
    %847 = vmatprep.subr.bf16.mxu0 0
    %848 = vmatpush1.bf16.msra.mxu0 %v820
    %849 = vmatprep.subr.bf16.mxu0 0
    %850 = vmatpush2.bf16.msra.mxu0 0
    %851 = vmatprep.subr.bf16.mxu0 0
    %852 = vmatpush2.bf16.msra.mxu0 0
    %853 = vmatprep.subr.bf16.mxu0 0
    %854 = vmatpush2.bf16.msra.mxu0 0
    %855 = vmatprep.subr.bf16.mxu0 0
    %856 = vmatpush2.bf16.msra.mxu0 0
    %857 = vmatprep.subr.bf16.mxu0 0
    %858 = vmatpush2.bf16.msra.mxu0 0
    %859 = vmatprep.subr.bf16.mxu0 0
    %860 = vmatpush2.bf16.msra.mxu0 0
    %861 = vmatprep.subr.bf16.mxu0 0
    %862 = vmatpush2.bf16.msra.mxu0 0
    %863 = vmatprep.subr.bf16.mxu0 0
    %864 = vmatpush2.bf16.msra.mxu0 0
    %865 = vmatprep.mubr.bf16.mxu0 0
    %866 = vmatmul.mubr.bf16.gmra.mxu0 %v819
    %v867 = vpop.f32.mrf.mxu0
    %v868 = vadd.f32 %v832, %v867
    %v869 = vpop.f32.mrf.mxu0
    %v870 = vpop.f32.mrf.mxu0
    %v871 = vadd.f32 %v832, %v870
    %v872 = vpop.f32.mrf.mxu0
    %873 = vdwg.mxu0
    %v874 = vld [vmem:[%s7 + $0x180] sm:$0xff]
    %v875 = vld [vmem:[%s7 + $0x188] sm:$0xff]
    %v876 = vld [vmem:[%s7 + $0x190] sm:$0xff]
    %v877 = vld [vmem:[%s7 + $0x198] sm:$0xff]
    %v878 = vld [vmem:[%s7 + $0x1a0] sm:$0xff]
    %v879 = vld [vmem:[%s7 + $0x1a8] sm:$0xff]
    %v880 = vld [vmem:[%s7 + $0x1b0] sm:$0xff]
    %v881 = vld [vmem:[%s7 + $0x1b8] sm:$0xff]
    %v882 = vld [vmem:[%s7 + $0x1c0] sm:$0xff]
    %v883 = vld [vmem:[%s7 + $0x1c8] sm:$0xff]
    %v884 = vld [vmem:[%s7 + $0x1d0] sm:$0xff]
    %v885 = vld [vmem:[%s7 + $0x1d8] sm:$0xff]
    %v886 = vld [vmem:[%s7 + $0x1e0] sm:$0xff]
    %v887 = vld [vmem:[%s7 + $0x1e8] sm:$0xff]
    %v888 = vld [vmem:[%s7 + $0x1f0] sm:$0xff]
    %v889 = vld [vmem:[%s7 + $0x1f8] sm:$0xff]
    %v890 = vpack.c.bf16 %v528, %v527
    %v891 = vpack.c.bf16 %v875, %v874
    %v892 = vpack.c.bf16 %v877, %v876
    %v893 = vpack.c.bf16 %v879, %v878
    %v894 = vpack.c.bf16 %v881, %v880
    %v895 = vpack.c.bf16 %v883, %v882
    %v896 = vpack.c.bf16 %v885, %v884
    %v897 = vpack.c.bf16 %v887, %v886
    %v898 = vpack.c.bf16 %v889, %v888
    %v899 = vld [vmem:[%s9 + $0x5] sm:$0x1]
    %v900 = vlaneseq
    %v901 = vshrl.u32 %v900, 7
    %v902 = vsub.s32 0, %v901
    %v903 = vrot.slane %v899, %v902
    %904 = vmatprep.subr.bf16.mxu0 0
    %905 = vmatpush1.bf16.msra.mxu0 %v898
    %906 = vmatprep.subr.bf16.mxu0 0
    %907 = vmatpush1.bf16.msra.mxu0 %v897
    %908 = vmatprep.subr.bf16.mxu0 0
    %909 = vmatpush1.bf16.msra.mxu0 %v896
    %910 = vmatprep.subr.bf16.mxu0 0
    %911 = vmatpush1.bf16.msra.mxu0 %v895
    %912 = vmatprep.subr.bf16.mxu0 0
    %913 = vmatpush1.bf16.msra.mxu0 %v894
    %914 = vmatprep.subr.bf16.mxu0 0
    %915 = vmatpush1.bf16.msra.mxu0 %v893
    %916 = vmatprep.subr.bf16.mxu0 0
    %917 = vmatpush1.bf16.msra.mxu0 %v892
    %918 = vmatprep.subr.bf16.mxu0 0
    %919 = vmatpush1.bf16.msra.mxu0 %v891
    %920 = vmatprep.subr.bf16.mxu0 0
    %921 = vmatpush2.bf16.msra.mxu0 0
    %922 = vmatprep.subr.bf16.mxu0 0
    %923 = vmatpush2.bf16.msra.mxu0 0
    %924 = vmatprep.subr.bf16.mxu0 0
    %925 = vmatpush2.bf16.msra.mxu0 0
    %926 = vmatprep.subr.bf16.mxu0 0
    %927 = vmatpush2.bf16.msra.mxu0 0
    %928 = vmatprep.subr.bf16.mxu0 0
    %929 = vmatpush2.bf16.msra.mxu0 0
    %930 = vmatprep.subr.bf16.mxu0 0
    %931 = vmatpush2.bf16.msra.mxu0 0
    %932 = vmatprep.subr.bf16.mxu0 0
    %933 = vmatpush2.bf16.msra.mxu0 0
    %934 = vmatprep.subr.bf16.mxu0 0
    %935 = vmatpush2.bf16.msra.mxu0 0
    %936 = vmatprep.mubr.bf16.mxu0 0
    %937 = vmatmul.mubr.bf16.gmra.mxu0 %v890
    %v938 = vpop.f32.mrf.mxu0
    %v939 = vadd.f32 %v903, %v938
    %v940 = vpop.f32.mrf.mxu0
    %v941 = vpop.f32.mrf.mxu0
    %v942 = vadd.f32 %v903, %v941
    %v943 = vpop.f32.mrf.mxu0
    %944 = vdwg.mxu0
    %v945 = vld [vmem:[%s6] sm:$0xff]
    %v946 = vld [vmem:[%s6 + $0x8] sm:$0xff]
    %v947 = vld [vmem:[%s6 + $0x10] sm:$0xff]
    %v948 = vld [vmem:[%s6 + $0x18] sm:$0xff]
    %v950 = vsel %vm508, %v945, 0
    %v953 = vsel %vm508, %v946, 0
    %v956 = vsel %vm508, %v947, 0
    %v959 = vsel %vm508, %v948, 0
    %961 = vmatprep.subr.mxu0 0.0
    %962 = vmatpush1.msra.mxu0 0.0
    %963 = vmatprep.subr.mxu0 0.0
    %964 = vmatpush1.msra.mxu0 0.0
    %965 = vmatprep.subr.mxu0 0.0
    %966 = vmatpush1.msra.mxu0 0.0
    %967 = vmatprep.subr.mxu0 0.0
    %968 = vmatpush1.msra.mxu0 0.0
    %969 = vmatprep.subr.mxu0 0.0
    %970 = vmatpush1.msra.mxu0 0.0
    %971 = vmatprep.subr.mxu0 0.0
    %972 = vmatpush1.msra.mxu0 0.0
    %973 = vmatprep.subr.mxu0 0.0
    %974 = vmatpush1.msra.mxu0 0.0
    %975 = vmatprep.subr.mxu0 0.0
    %976 = vmatpush1.msra.mxu0 0.0
    %977 = vmatprep.subr.mxu0 0.0
    %978 = vmatpush1.msra.mxu0 0.0
    %979 = vmatprep.subr.mxu0 0.0
    %980 = vmatpush1.msra.mxu0 0.0
    %981 = vmatprep.subr.mxu0 0.0
    %982 = vmatpush1.msra.mxu0 0.0
    %983 = vmatprep.subr.mxu0 0.0
    %984 = vmatpush1.msra.mxu0 0.0
    %985 = vmatprep.subr.mxu0 0.0
    %986 = vmatpush1.msra.mxu0 %v942
    %987 = vmatprep.subr.mxu0 0.0
    %988 = vmatpush1.msra.mxu0 %v939
    %989 = vmatprep.subr.mxu0 0.0
    %990 = vmatpush1.msra.mxu0 %v871
    %991 = vmatprep.subr.mxu0 0.0
    %992 = vmatpush1.msra.mxu0 %v868
    %993 = vmatprep.subr.mxu0 0.0
    %994 = vmatpush2.msra.mxu0 0.0
    %995 = vmatprep.subr.mxu0 0.0
    %996 = vmatpush2.msra.mxu0 0.0
    %997 = vmatprep.subr.mxu0 0.0
    %998 = vmatpush2.msra.mxu0 0.0
    %999 = vmatprep.subr.mxu0 0.0
    %1000 = vmatpush2.msra.mxu0 0.0
    %1001 = vmatprep.subr.mxu0 0.0
    %1002 = vmatpush2.msra.mxu0 0.0
    %1003 = vmatprep.subr.mxu0 0.0
    %1004 = vmatpush2.msra.mxu0 0.0
    %1005 = vmatprep.subr.mxu0 0.0
    %1006 = vmatpush2.msra.mxu0 0.0
    %1007 = vmatprep.subr.mxu0 0.0
    %1008 = vmatpush2.msra.mxu0 0.0
    %1009 = vmatprep.subr.mxu0 0.0
    %1010 = vmatpush2.msra.mxu0 0.0
    %1011 = vmatprep.subr.mxu0 0.0
    %1012 = vmatpush2.msra.mxu0 0.0
    %1013 = vmatprep.subr.mxu0 0.0
    %1014 = vmatpush2.msra.mxu0 0.0
    %1015 = vmatprep.subr.mxu0 0.0
    %1016 = vmatpush2.msra.mxu0 0.0
    %1017 = vmatprep.subr.mxu0 0.0
    %1018 = vmatpush2.msra.mxu0 0.0
    %1019 = vmatprep.subr.mxu0 0.0
    %1020 = vmatpush2.msra.mxu0 0.0
    %1021 = vmatprep.subr.mxu0 0.0
    %1022 = vmatpush2.msra.mxu0 0.0
    %1023 = vmatprep.subr.mxu0 0.0
    %1024 = vmatpush2.msra.mxu0 0.0
    %1025 = vmatprep.mubr.f32.mxu0 0.0
    %1026 = vmatmul.mubr.f32.gmra.mxu0 %v950
    %v1027 = vpop.f32.mrf.mxu0
    %v1028 = vadd.f32 0.0, %v1027
    %v1029 = vpop.f32.mrf.mxu0
    %1030 = vmatprep.mubr.f32.mxu0 0.0
    %1031 = vmatmul.mubr.f32.gmra.mxu0 %v953
    %v1032 = vpop.f32.mrf.mxu0
    %v1033 = vadd.f32 0.0, %v1032
    %v1034 = vpop.f32.mrf.mxu0
    %1035 = vmatprep.mubr.f32.mxu0 0.0
    %1036 = vmatmul.mubr.f32.gmra.mxu0 %v956
    %v1037 = vpop.f32.mrf.mxu0
    %v1038 = vadd.f32 0.0, %v1037
    %v1039 = vpop.f32.mrf.mxu0
    %1040 = vmatprep.mubr.f32.mxu0 0.0
    %1041 = vmatmul.mubr.f32.gmra.mxu0 %v959
    %v1042 = vpop.f32.mrf.mxu0
    %v1043 = vadd.f32 0.0, %v1042
    %v1044 = vpop.f32.mrf.mxu0
    %1045 = vdwg.mxu0
    %1046 = vmatprep.subr.mxu0 0.0
    %1047 = vmatpush1.msra.mxu0 0.0
    %1048 = vmatprep.subr.mxu0 0.0
    %1049 = vmatpush1.msra.mxu0 0.0
    %1050 = vmatprep.subr.mxu0 0.0
    %1051 = vmatpush1.msra.mxu0 0.0
    %1052 = vmatprep.subr.mxu0 0.0
    %1053 = vmatpush1.msra.mxu0 0.0
    %1054 = vmatprep.subr.mxu0 0.0
    %1055 = vmatpush1.msra.mxu0 0.0
    %1056 = vmatprep.subr.mxu0 0.0
    %1057 = vmatpush1.msra.mxu0 0.0
    %1058 = vmatprep.subr.mxu0 0.0
    %1059 = vmatpush1.msra.mxu0 0.0
    %1060 = vmatprep.subr.mxu0 0.0
    %1061 = vmatpush1.msra.mxu0 0.0
    %1062 = vmatprep.subr.mxu0 0.0
    %1063 = vmatpush1.msra.mxu0 0.0
    %1064 = vmatprep.subr.mxu0 0.0
    %1065 = vmatpush1.msra.mxu0 0.0
    %1066 = vmatprep.subr.mxu0 0.0
    %1067 = vmatpush1.msra.mxu0 0.0
    %1068 = vmatprep.subr.mxu0 0.0
    %1069 = vmatpush1.msra.mxu0 0.0
    %1070 = vmatprep.subr.mxu0 0.0
    %1071 = vmatpush1.msra.mxu0 %v105
    %1072 = vmatprep.subr.mxu0 0.0
    %1073 = vmatpush1.msra.mxu0 %v104
    %1074 = vmatprep.subr.mxu0 0.0
    %1075 = vmatpush1.msra.mxu0 %v103
    %1076 = vmatprep.subr.mxu0 0.0
    %1077 = vmatpush1.msra.mxu0 %v102
    %1078 = vmatprep.subr.mxu0 0.0
    %1079 = vmatpush2.msra.mxu0 0.0
    %1080 = vmatprep.subr.mxu0 0.0
    %1081 = vmatpush2.msra.mxu0 0.0
    %1082 = vmatprep.subr.mxu0 0.0
    %1083 = vmatpush2.msra.mxu0 0.0
    %1084 = vmatprep.subr.mxu0 0.0
    %1085 = vmatpush2.msra.mxu0 0.0
    %1086 = vmatprep.subr.mxu0 0.0
    %1087 = vmatpush2.msra.mxu0 0.0
    %1088 = vmatprep.subr.mxu0 0.0
    %1089 = vmatpush2.msra.mxu0 0.0
    %1090 = vmatprep.subr.mxu0 0.0
    %1091 = vmatpush2.msra.mxu0 0.0
    %1092 = vmatprep.subr.mxu0 0.0
    %1093 = vmatpush2.msra.mxu0 0.0
    %1094 = vmatprep.subr.mxu0 0.0
    %1095 = vmatpush2.msra.mxu0 0.0
    %1096 = vmatprep.subr.mxu0 0.0
    %1097 = vmatpush2.msra.mxu0 0.0
    %1098 = vmatprep.subr.mxu0 0.0
    %1099 = vmatpush2.msra.mxu0 0.0
    %1100 = vmatprep.subr.mxu0 0.0
    %1101 = vmatpush2.msra.mxu0 0.0
    %1102 = vmatprep.subr.mxu0 0.0
    %1103 = vmatpush2.msra.mxu0 0.0
    %1104 = vmatprep.subr.mxu0 0.0
    %1105 = vmatpush2.msra.mxu0 0.0
    %1106 = vmatprep.subr.mxu0 0.0
    %1107 = vmatpush2.msra.mxu0 0.0
    %1108 = vmatprep.subr.mxu0 0.0
    %1109 = vmatpush2.msra.mxu0 0.0
    %1110 = vmatprep.mubr.f32.mxu0 0.0
    %1111 = vmatmul.mubr.f32.gmra.mxu0 %v950
    %v1112 = vpop.f32.mrf.mxu0
    %v1113 = vadd.f32 0.0, %v1112
    %v1114 = vpop.f32.mrf.mxu0
    %1115 = vmatprep.mubr.f32.mxu0 0.0
    %1116 = vmatmul.mubr.f32.gmra.mxu0 %v953
    %v1117 = vpop.f32.mrf.mxu0
    %v1118 = vadd.f32 0.0, %v1117
    %v1119 = vpop.f32.mrf.mxu0
    %1120 = vmatprep.mubr.f32.mxu0 0.0
    %1121 = vmatmul.mubr.f32.gmra.mxu0 %v956
    %v1122 = vpop.f32.mrf.mxu0
    %v1123 = vadd.f32 0.0, %v1122
    %v1124 = vpop.f32.mrf.mxu0
    %1125 = vmatprep.mubr.f32.mxu0 0.0
    %1126 = vmatmul.mubr.f32.gmra.mxu0 %v959
    %v1127 = vpop.f32.mrf.mxu0
    %v1128 = vadd.f32 0.0, %v1127
    %v1129 = vpop.f32.mrf.mxu0
    %1130 = vdwg.mxu0
    %1133 = vrot.lane.b32.xlu0 %v1113, 32
    %v1134 = vpop.permute.xlu0 %1133
    %1135 = vrot.lane.b32.xlu0 %v1118, 32
    %v1136 = vpop.permute.xlu0 %1135
    %1141 = vrot.lane.b32.xlu0 %v1038, 64
    %v1142 = vpop.permute.xlu0 %1141
    %1143 = vrot.lane.b32.xlu0 %v1043, 64
    %v1144 = vpop.permute.xlu0 %1143
    %1149 = vrot.lane.b32.xlu0 %v1123, 96
    %v1150 = vpop.permute.xlu0 %1149
    %1151 = vrot.lane.b32.xlu0 %v1128, 96
    %v1152 = vpop.permute.xlu0 %1151
    %v1155 = vsel %vm508, %v1028, %v1134
    %v1156 = vsel %vm508, %v1033, %v1136
    %v1157 = vsel %vm515, %v1155, %v1142
    %v1158 = vsel %vm515, %v1156, %v1144
    %v1159 = vsel %vm522, %v1157, %v1150
    %v1160 = vsel %vm522, %v1158, %v1152
    %v1161 = vld [vmem:[%s7 + $0x80] sm:$0xff]
    %v1162 = vld [vmem:[%s7 + $0x88] sm:$0xff]
    %v1163 = vld [vmem:[%s7 + $0x90] sm:$0xff]
    %v1164 = vld [vmem:[%s7 + $0x98] sm:$0xff]
    %v1165 = vld [vmem:[%s7 + $0xa0] sm:$0xff]
    %v1166 = vld [vmem:[%s7 + $0xa8] sm:$0xff]
    %v1167 = vld [vmem:[%s7 + $0xb0] sm:$0xff]
    %v1168 = vld [vmem:[%s7 + $0xb8] sm:$0xff]
    %v1169 = vld [vmem:[%s7 + $0xc0] sm:$0xff]
    %v1170 = vld [vmem:[%s7 + $0xc8] sm:$0xff]
    %v1171 = vld [vmem:[%s7 + $0xd0] sm:$0xff]
    %v1172 = vld [vmem:[%s7 + $0xd8] sm:$0xff]
    %v1173 = vld [vmem:[%s7 + $0xe0] sm:$0xff]
    %v1174 = vld [vmem:[%s7 + $0xe8] sm:$0xff]
    %v1175 = vld [vmem:[%s7 + $0xf0] sm:$0xff]
    %v1176 = vld [vmem:[%s7 + $0xf8] sm:$0xff]
    %v1177 = vpack.c.bf16 %v1160, %v1159
    %v1178 = vpack.c.bf16 %v1162, %v1161
    %v1179 = vpack.c.bf16 %v1164, %v1163
    %v1180 = vpack.c.bf16 %v1166, %v1165
    %v1181 = vpack.c.bf16 %v1168, %v1167
    %v1182 = vpack.c.bf16 %v1170, %v1169
    %v1183 = vpack.c.bf16 %v1172, %v1171
    %v1184 = vpack.c.bf16 %v1174, %v1173
    %v1185 = vpack.c.bf16 %v1176, %v1175
    %v1186 = vld [vmem:[%s9 + $0x3] sm:$0x1]
    %v1187 = vlaneseq
    %v1188 = vshrl.u32 %v1187, 7
    %v1189 = vsub.s32 0, %v1188
    %v1190 = vrot.slane %v1186, %v1189
    %1191 = vmatprep.subr.bf16.mxu0 0
    %1192 = vmatpush1.bf16.msra.mxu0 %v1185
    %1193 = vmatprep.subr.bf16.mxu0 0
    %1194 = vmatpush1.bf16.msra.mxu0 %v1184
    %1195 = vmatprep.subr.bf16.mxu0 0
    %1196 = vmatpush1.bf16.msra.mxu0 %v1183
    %1197 = vmatprep.subr.bf16.mxu0 0
    %1198 = vmatpush1.bf16.msra.mxu0 %v1182
    %1199 = vmatprep.subr.bf16.mxu0 0
    %1200 = vmatpush1.bf16.msra.mxu0 %v1181
    %1201 = vmatprep.subr.bf16.mxu0 0
    %1202 = vmatpush1.bf16.msra.mxu0 %v1180
    %1203 = vmatprep.subr.bf16.mxu0 0
    %1204 = vmatpush1.bf16.msra.mxu0 %v1179
    %1205 = vmatprep.subr.bf16.mxu0 0
    %1206 = vmatpush1.bf16.msra.mxu0 %v1178
    %1207 = vmatprep.subr.bf16.mxu0 0
    %1208 = vmatpush2.bf16.msra.mxu0 0
    %1209 = vmatprep.subr.bf16.mxu0 0
    %1210 = vmatpush2.bf16.msra.mxu0 0
    %1211 = vmatprep.subr.bf16.mxu0 0
    %1212 = vmatpush2.bf16.msra.mxu0 0
    %1213 = vmatprep.subr.bf16.mxu0 0
    %1214 = vmatpush2.bf16.msra.mxu0 0
    %1215 = vmatprep.subr.bf16.mxu0 0
    %1216 = vmatpush2.bf16.msra.mxu0 0
    %1217 = vmatprep.subr.bf16.mxu0 0
    %1218 = vmatpush2.bf16.msra.mxu0 0
    %1219 = vmatprep.subr.bf16.mxu0 0
    %1220 = vmatpush2.bf16.msra.mxu0 0
    %1221 = vmatprep.subr.bf16.mxu0 0
    %1222 = vmatpush2.bf16.msra.mxu0 0
    %1223 = vmatprep.mubr.bf16.mxu0 0
    %1224 = vmatmul.mubr.bf16.gmra.mxu0 %v1177
    %v1225 = vpop.f32.mrf.mxu0
    %v1226 = vadd.f32 %v1190, %v1225
    %v1227 = vpop.f32.mrf.mxu0
    %v1228 = vpop.f32.mrf.mxu0
    %v1229 = vadd.f32 %v1190, %v1228
    %v1230 = vpop.f32.mrf.mxu0
    %1231 = vdwg.mxu0
    %v1232 = vld [vmem:[%s8 + $0x20] sm:$0xff]
    %v1233 = vld [vmem:[%s8 + $0x28] sm:$0xff]
    %v1234 = vld [vmem:[%s8 + $0x30] sm:$0xff]
    %v1235 = vld [vmem:[%s8 + $0x38] sm:$0xff]
    %v1236 = vld [vmem:[%s10 + $0x2] sm:$0x1]
    %v1237 = vld [vmem:[%s10 + $0x3] sm:$0x1]
    %v1238 = vld [vmem:[%s7 + $0x240] sm:$0xff]
    %v1239 = vld [vmem:[%s7 + $0x248] sm:$0xff]
    %v1240 = vld [vmem:[%s7 + $0x250] sm:$0xff]
    %v1241 = vld [vmem:[%s7 + $0x258] sm:$0xff]
    %v1242 = vld [vmem:[%s7 + $0x260] sm:$0xff]
    %v1243 = vld [vmem:[%s7 + $0x268] sm:$0xff]
    %v1244 = vld [vmem:[%s7 + $0x270] sm:$0xff]
    %v1245 = vld [vmem:[%s7 + $0x278] sm:$0xff]
    %v1246 = vld [vmem:[%s9 + $0x6] sm:$0x1]
    %v1247 = vld [vmem:[%s9 + $0x7] sm:$0x1]
    %s1248 = sadd.f32 %s53, 1.0
    %v1249 = vstv %s1248
    %v1250 = vmul.f32 %v1249, %v100
    %v1251 = vmul.f32 %v1249, %v101
    %v1252 = vadd.f32 %v1226, %v1250
    %v1253 = vadd.f32 %v1229, %v1251
    %v1254 = vpack.c.bf16 %v1253, %v1252
    %v1255 = vpack.c.bf16 %v1233, %v1232
    %v1256 = vpack.c.bf16 %v1235, %v1234
    %v1258 = vsel %vm508, %v1254, 0
    %1260 = vmatprep.subr.bf16.mxu0 0
    %1261 = vmatpush1.bf16.msra.mxu0 0
    %1262 = vmatprep.subr.bf16.mxu0 0
    %1263 = vmatpush1.bf16.msra.mxu0 0
    %1264 = vmatprep.subr.bf16.mxu0 0
    %1265 = vmatpush1.bf16.msra.mxu0 0
    %1266 = vmatprep.subr.bf16.mxu0 0
    %1267 = vmatpush1.bf16.msra.mxu0 0
    %1268 = vmatprep.subr.bf16.mxu0 0
    %1269 = vmatpush1.bf16.msra.mxu0 0
    %1270 = vmatprep.subr.bf16.mxu0 0
    %1271 = vmatpush1.bf16.msra.mxu0 0
    %1272 = vmatprep.subr.bf16.mxu0 0
    %1273 = vmatpush1.bf16.msra.mxu0 %v1256
    %1274 = vmatprep.subr.bf16.mxu0 0
    %1275 = vmatpush1.bf16.msra.mxu0 %v1255
    %1276 = vmatprep.subr.bf16.mxu0 0
    %1277 = vmatpush2.bf16.msra.mxu0 0
    %1278 = vmatprep.subr.bf16.mxu0 0
    %1279 = vmatpush2.bf16.msra.mxu0 0
    %1280 = vmatprep.subr.bf16.mxu0 0
    %1281 = vmatpush2.bf16.msra.mxu0 0
    %1282 = vmatprep.subr.bf16.mxu0 0
    %1283 = vmatpush2.bf16.msra.mxu0 0
    %1284 = vmatprep.subr.bf16.mxu0 0
    %1285 = vmatpush2.bf16.msra.mxu0 0
    %1286 = vmatprep.subr.bf16.mxu0 0
    %1287 = vmatpush2.bf16.msra.mxu0 0
    %1288 = vmatprep.subr.bf16.mxu0 0
    %1289 = vmatpush2.bf16.msra.mxu0 0
    %1290 = vmatprep.subr.bf16.mxu0 0
    %1291 = vmatpush2.bf16.msra.mxu0 0
    %1292 = vmatprep.mubr.bf16.mxu0 0
    %1293 = vmatmul.mubr.bf16.gmra.mxu0 %v1258
    %v1294 = vpop.f32.mrf.mxu0
    %v1295 = vadd.f32 0.0, %v1294
    %v1296 = vpop.f32.mrf.mxu0
    %v1297 = vpop.f32.mrf.mxu0
    %v1298 = vadd.f32 0.0, %v1297
    %v1299 = vpop.f32.mrf.mxu0
    %1300 = vdwg.mxu0
    %v1301 = vsel %vm515, %v1295, 0.0
    %v1302 = vsel %vm515, %v1298, 0.0
    %v1303 = vadd.f32 %v1301, %v1302
    %v1304 = vrot.slane %v1303, 4
    %v1305 = vadd.f32 %v1303, %v1304
    %v1306 = vrot.slane %v1305, 2
    %v1307 = vadd.f32 %v1305, %v1306
    %v1308 = vrot.slane %v1307, 1
    %v1309 = vadd.f32 %v1307, %v1308
    %v1310 = vmul.f32 %v1309, %v678
    %v1311 = vsub.f32 %v1295, %v1310
    %v1312 = vsub.f32 %v1298, %v1310
    %v1313 = vmul.f32 %v1311, %v1311
    %v1314 = vmul.f32 %v1312, %v1312
    %v1315 = vsel %vm515, %v1313, 0.0
    %v1316 = vsel %vm515, %v1314, 0.0
    %v1317 = vadd.f32 %v1315, %v1316
    %v1318 = vrot.slane %v1317, 4
    %v1319 = vadd.f32 %v1317, %v1318
    %v1320 = vrot.slane %v1319, 2
    %v1321 = vadd.f32 %v1319, %v1320
    %v1322 = vrot.slane %v1321, 1
    %v1323 = vadd.f32 %v1321, %v1322
    %v1324 = vmul.f32 %v1323, %v678
    %v1325 = vadd.f32 %v1324, 1e-05
    %v1326 = vrsqrt.pop %v1325
    %v1327 = vmul.f32 %v1311, %v1326
    %v1328 = vmul.f32 %v1312, %v1326
    %v1329 = vlaneseq
    %v1330 = vshrl.u32 %v1329, 7
    %v1331 = vsub.s32 0, %v1330
    %v1332 = vrot.slane %v1236, %v1331
    %v1333 = vmul.f32 %v1327, %v1332
    %v1334 = vmul.f32 %v1328, %v1332
    %v1335 = vlaneseq
    %v1336 = vshrl.u32 %v1335, 7
    %v1337 = vsub.s32 0, %v1336
    %v1338 = vrot.slane %v1237, %v1337
    %v1339 = vadd.f32 %v1333, %v1338
    %v1340 = vadd.f32 %v1334, %v1338
    %v1341 = vmax.f32 %v1339, 0.0
    %v1342 = vmax.f32 %v1340, 0.0
    %v1343 = vpack.c.bf16 %v1342, %v1341
    %v1344 = vpack.c.bf16 %v1239, %v1238
    %v1345 = vpack.c.bf16 %v1241, %v1240
    %v1346 = vpack.c.bf16 %v1243, %v1242
    %v1347 = vpack.c.bf16 %v1245, %v1244
    %v1349 = vsel %vm515, %v1343, 0
    %1351 = vmatprep.subr.bf16.mxu0 0
    %1352 = vmatpush1.bf16.msra.mxu0 0
    %1353 = vmatprep.subr.bf16.mxu0 0
    %1354 = vmatpush1.bf16.msra.mxu0 0
    %1355 = vmatprep.subr.bf16.mxu0 0
    %1356 = vmatpush1.bf16.msra.mxu0 0
    %1357 = vmatprep.subr.bf16.mxu0 0
    %1358 = vmatpush1.bf16.msra.mxu0 0
    %1359 = vmatprep.subr.bf16.mxu0 0
    %1360 = vmatpush1.bf16.msra.mxu0 %v1347
    %1361 = vmatprep.subr.bf16.mxu0 0
    %1362 = vmatpush1.bf16.msra.mxu0 %v1346
    %1363 = vmatprep.subr.bf16.mxu0 0
    %1364 = vmatpush1.bf16.msra.mxu0 %v1345
    %1365 = vmatprep.subr.bf16.mxu0 0
    %1366 = vmatpush1.bf16.msra.mxu0 %v1344
    %1367 = vmatprep.subr.bf16.mxu0 0
    %1368 = vmatpush2.bf16.msra.mxu0 0
    %1369 = vmatprep.subr.bf16.mxu0 0
    %1370 = vmatpush2.bf16.msra.mxu0 0
    %1371 = vmatprep.subr.bf16.mxu0 0
    %1372 = vmatpush2.bf16.msra.mxu0 0
    %1373 = vmatprep.subr.bf16.mxu0 0
    %1374 = vmatpush2.bf16.msra.mxu0 0
    %1375 = vmatprep.subr.bf16.mxu0 0
    %1376 = vmatpush2.bf16.msra.mxu0 0
    %1377 = vmatprep.subr.bf16.mxu0 0
    %1378 = vmatpush2.bf16.msra.mxu0 0
    %1379 = vmatprep.subr.bf16.mxu0 0
    %1380 = vmatpush2.bf16.msra.mxu0 0
    %1381 = vmatprep.subr.bf16.mxu0 0
    %1382 = vmatpush2.bf16.msra.mxu0 0
    %1383 = vmatprep.mubr.bf16.mxu0 0
    %1384 = vmatmul.mubr.bf16.gmra.mxu0 %v1349
    %v1385 = vpop.f32.mrf.mxu0
    %v1386 = vadd.f32 0.0, %v1385
    %v1387 = vpop.f32.mrf.mxu0
    %v1388 = vpop.f32.mrf.mxu0
    %v1389 = vadd.f32 0.0, %v1388
    %v1390 = vpop.f32.mrf.mxu0
    %1391 = vdwg.mxu0
    %v1392 = vsel %vm508, %v1386, 0.0
    %v1393 = vsel %vm508, %v1389, 0.0
    %v1394 = vadd.f32 %v1392, %v1393
    %v1395 = vrot.slane %v1394, 4
    %v1396 = vadd.f32 %v1394, %v1395
    %v1397 = vrot.slane %v1396, 2
    %v1398 = vadd.f32 %v1396, %v1397
    %v1399 = vrot.slane %v1398, 1
    %v1400 = vadd.f32 %v1398, %v1399
    %v1401 = vmul.f32 %v1400, %v678
    %v1402 = vsub.f32 %v1386, %v1401
    %v1403 = vsub.f32 %v1389, %v1401
    %v1404 = vmul.f32 %v1402, %v1402
    %v1405 = vmul.f32 %v1403, %v1403
    %v1406 = vsel %vm508, %v1404, 0.0
    %v1407 = vsel %vm508, %v1405, 0.0
    %v1408 = vadd.f32 %v1406, %v1407
    %v1409 = vrot.slane %v1408, 4
    %v1410 = vadd.f32 %v1408, %v1409
    %v1411 = vrot.slane %v1410, 2
    %v1412 = vadd.f32 %v1410, %v1411
    %v1413 = vrot.slane %v1412, 1
    %v1414 = vadd.f32 %v1412, %v1413
    %v1415 = vmul.f32 %v1414, %v678
    %v1416 = vadd.f32 %v1415, 1e-05
    %v1417 = vrsqrt.pop %v1416
    %v1418 = vmul.f32 %v1402, %v1417
    %v1419 = vmul.f32 %v1403, %v1417
    %v1420 = vlaneseq
    %v1421 = vshrl.u32 %v1420, 7
    %v1422 = vsub.s32 0, %v1421
    %v1423 = vrot.slane %v1246, %v1422
    %v1424 = vmul.f32 %v1418, %v1423
    %v1425 = vmul.f32 %v1419, %v1423
    %v1426 = vlaneseq
    %v1427 = vshrl.u32 %v1426, 7
    %v1428 = vsub.s32 0, %v1427
    %v1429 = vrot.slane %v1247, %v1428
    %v1430 = vadd.f32 %v1424, %v1429
    %v1431 = vadd.f32 %v1425, %v1429
    %v1432 = vmax.f32 %v1430, 0.0
    %v1433 = vmax.f32 %v1431, 0.0
    %v1434 = vld [vmem:[%s7 + $0x2c0] sm:$0xff]
    %v1435 = vld [vmem:[%s7 + $0x2c8] sm:$0xff]
    %v1436 = vld [vmem:[%s7 + $0x2d0] sm:$0xff]
    %v1437 = vld [vmem:[%s7 + $0x2d8] sm:$0xff]
    %v1438 = vpack.c.bf16 %v802, %v801
    %v1439 = vpack.c.bf16 %v1435, %v1434
    %v1440 = vpack.c.bf16 %v1437, %v1436
    %v1441 = vld [vmem:[%s7 + $0x2e0] sm:$0xff]
    %v1442 = vld [vmem:[%s7 + $0x2e8] sm:$0xff]
    %v1443 = vld [vmem:[%s7 + $0x2f0] sm:$0xff]
    %v1444 = vld [vmem:[%s7 + $0x2f8] sm:$0xff]
    %v1445 = vpack.c.bf16 %v1433, %v1432
    %v1446 = vpack.c.bf16 %v1442, %v1441
    %v1447 = vpack.c.bf16 %v1444, %v1443
    %v1449 = vsel %vm508, %v1445, 0
    %1451 = vmatprep.subr.bf16.mxu0 0
    %1452 = vmatpush1.bf16.msra.mxu0 0
    %1453 = vmatprep.subr.bf16.mxu0 0
    %1454 = vmatpush1.bf16.msra.mxu0 0
    %1455 = vmatprep.subr.bf16.mxu0 0
    %1456 = vmatpush1.bf16.msra.mxu0 0
    %1457 = vmatprep.subr.bf16.mxu0 0
    %1458 = vmatpush1.bf16.msra.mxu0 0
    %1459 = vmatprep.subr.bf16.mxu0 0
    %1460 = vmatpush1.bf16.msra.mxu0 0
    %1461 = vmatprep.subr.bf16.mxu0 0
    %1462 = vmatpush1.bf16.msra.mxu0 0
    %1463 = vmatprep.subr.bf16.mxu0 0
    %1464 = vmatpush1.bf16.msra.mxu0 %v1447
    %1465 = vmatprep.subr.bf16.mxu0 0
    %1466 = vmatpush1.bf16.msra.mxu0 %v1446
    %1467 = vmatprep.subr.bf16.mxu0 0
    %1468 = vmatpush2.bf16.msra.mxu0 0
    %1469 = vmatprep.subr.bf16.mxu0 0
    %1470 = vmatpush2.bf16.msra.mxu0 0
    %1471 = vmatprep.subr.bf16.mxu0 0
    %1472 = vmatpush2.bf16.msra.mxu0 0
    %1473 = vmatprep.subr.bf16.mxu0 0
    %1474 = vmatpush2.bf16.msra.mxu0 0
    %1475 = vmatprep.subr.bf16.mxu0 0
    %1476 = vmatpush2.bf16.msra.mxu0 0
    %1477 = vmatprep.subr.bf16.mxu0 0
    %1478 = vmatpush2.bf16.msra.mxu0 0
    %1479 = vmatprep.subr.bf16.mxu0 0
    %1480 = vmatpush2.bf16.msra.mxu0 0
    %1481 = vmatprep.subr.bf16.mxu0 0
    %1482 = vmatpush2.bf16.msra.mxu0 0
    %1483 = vmatprep.mubr.bf16.mxu0 0
    %1484 = vmatmul.mubr.bf16.gmra.mxu0 %v1449
    %v1485 = vpop.f32.mrf.mxu0
    %v1486 = vadd.f32 0.0, %v1485
    %v1487 = vpop.f32.mrf.mxu0
    %v1488 = vpop.f32.mrf.mxu0
    %v1489 = vadd.f32 0.0, %v1488
    %v1490 = vpop.f32.mrf.mxu0
    %1491 = vdwg.mxu0
    %v1493 = vsel %vm508, %v1438, 0
    %1495 = vmatprep.subr.bf16.mxu0 0
    %1496 = vmatpush1.bf16.msra.mxu0 0
    %1497 = vmatprep.subr.bf16.mxu0 0
    %1498 = vmatpush1.bf16.msra.mxu0 0
    %1499 = vmatprep.subr.bf16.mxu0 0
    %1500 = vmatpush1.bf16.msra.mxu0 0
    %1501 = vmatprep.subr.bf16.mxu0 0
    %1502 = vmatpush1.bf16.msra.mxu0 0
    %1503 = vmatprep.subr.bf16.mxu0 0
    %1504 = vmatpush1.bf16.msra.mxu0 0
    %1505 = vmatprep.subr.bf16.mxu0 0
    %1506 = vmatpush1.bf16.msra.mxu0 0
    %1507 = vmatprep.subr.bf16.mxu0 0
    %1508 = vmatpush1.bf16.msra.mxu0 %v1440
    %1509 = vmatprep.subr.bf16.mxu0 0
    %1510 = vmatpush1.bf16.msra.mxu0 %v1439
    %1511 = vmatprep.subr.bf16.mxu0 0
    %1512 = vmatpush2.bf16.msra.mxu0 0
    %1513 = vmatprep.subr.bf16.mxu0 0
    %1514 = vmatpush2.bf16.msra.mxu0 0
    %1515 = vmatprep.subr.bf16.mxu0 0
    %1516 = vmatpush2.bf16.msra.mxu0 0
    %1517 = vmatprep.subr.bf16.mxu0 0
    %1518 = vmatpush2.bf16.msra.mxu0 0
    %1519 = vmatprep.subr.bf16.mxu0 0
    %1520 = vmatpush2.bf16.msra.mxu0 0
    %1521 = vmatprep.subr.bf16.mxu0 0
    %1522 = vmatpush2.bf16.msra.mxu0 0
    %1523 = vmatprep.subr.bf16.mxu0 0
    %1524 = vmatpush2.bf16.msra.mxu0 0
    %1525 = vmatprep.subr.bf16.mxu0 0
    %1526 = vmatpush2.bf16.msra.mxu0 0
    %1527 = vmatprep.mubr.bf16.mxu0 0
    %1528 = vmatmul.mubr.bf16.gmra.mxu0 %v1493
    %v1529 = vpop.f32.mrf.mxu0
    %v1530 = vadd.f32 %v1486, %v1529
    %v1531 = vpop.f32.mrf.mxu0
    %v1532 = vpop.f32.mrf.mxu0
    %v1533 = vadd.f32 %v1489, %v1532
    %v1534 = vpop.f32.mrf.mxu0
    %1535 = vdwg.mxu0
    %v1536 = vld [vmem:[%s9 + $0xa] sm:$0x1]
    %v1537 = vld [vmem:[%s9 + $0xb] sm:$0x1]
    %v1538 = vsel %vm508, %v1530, 0.0
    %v1539 = vsel %vm508, %v1533, 0.0
    %v1540 = vadd.f32 %v1538, %v1539
    %v1541 = vrot.slane %v1540, 4
    %v1542 = vadd.f32 %v1540, %v1541
    %v1543 = vrot.slane %v1542, 2
    %v1544 = vadd.f32 %v1542, %v1543
    %v1545 = vrot.slane %v1544, 1
    %v1546 = vadd.f32 %v1544, %v1545
    %v1547 = vmul.f32 %v1546, %v678
    %v1548 = vsub.f32 %v1530, %v1547
    %v1549 = vsub.f32 %v1533, %v1547
    %v1550 = vmul.f32 %v1548, %v1548
    %v1551 = vmul.f32 %v1549, %v1549
    %v1552 = vsel %vm508, %v1550, 0.0
    %v1553 = vsel %vm508, %v1551, 0.0
    %v1554 = vadd.f32 %v1552, %v1553
    %v1555 = vrot.slane %v1554, 4
    %v1556 = vadd.f32 %v1554, %v1555
    %v1557 = vrot.slane %v1556, 2
    %v1558 = vadd.f32 %v1556, %v1557
    %v1559 = vrot.slane %v1558, 1
    %v1560 = vadd.f32 %v1558, %v1559
    %v1561 = vmul.f32 %v1560, %v678
    %v1562 = vadd.f32 %v1561, 1e-05
    %v1563 = vrsqrt.pop %v1562
    %v1564 = vmul.f32 %v1548, %v1563
    %v1565 = vmul.f32 %v1549, %v1563
    %v1566 = vlaneseq
    %v1567 = vshrl.u32 %v1566, 7
    %v1568 = vsub.s32 0, %v1567
    %v1569 = vrot.slane %v1536, %v1568
    %v1570 = vmul.f32 %v1564, %v1569
    %v1571 = vmul.f32 %v1565, %v1569
    %v1572 = vlaneseq
    %v1573 = vshrl.u32 %v1572, 7
    %v1574 = vsub.s32 0, %v1573
    %v1575 = vrot.slane %v1537, %v1574
    %v1576 = vadd.f32 %v1570, %v1575
    %v1577 = vadd.f32 %v1571, %v1575
    %v1578 = vmax.f32 %v1576, 0.0
    %v1579 = vmax.f32 %v1577, 0.0
    %v1580 = vadd.f32 %v100, %v1578
    %v1581 = vadd.f32 %v101, %v1579
    %1582 = vst.msk [vmem:[%s11] sm:$0xff] %vm508, %v1580
    %1583 = vst.msk [vmem:[%s11 + $0x8] sm:$0xff] %vm508, %v1581
    %v1584 = vld [vmem:[%s8 + $0x40] sm:$0xff]
    %v1585 = vld [vmem:[%s8 + $0x48] sm:$0xff]
    %v1586 = vld [vmem:[%s8 + $0x50] sm:$0xff]
    %v1587 = vld [vmem:[%s8 + $0x58] sm:$0xff]
    %v1588 = vld [vmem:[%s10 + $0x4] sm:$0x1]
    %v1589 = vld [vmem:[%s10 + $0x5] sm:$0x1]
    %v1590 = vld [vmem:[%s7 + $0x280] sm:$0xff]
    %v1591 = vld [vmem:[%s7 + $0x288] sm:$0xff]
    %v1592 = vld [vmem:[%s7 + $0x290] sm:$0xff]
    %v1593 = vld [vmem:[%s7 + $0x298] sm:$0xff]
    %v1594 = vld [vmem:[%s7 + $0x2a0] sm:$0xff]
    %v1595 = vld [vmem:[%s7 + $0x2a8] sm:$0xff]
    %v1596 = vld [vmem:[%s7 + $0x2b0] sm:$0xff]
    %v1597 = vld [vmem:[%s7 + $0x2b8] sm:$0xff]
    %v1598 = vld [vmem:[%s9 + $0x8] sm:$0x1]
    %v1599 = vld [vmem:[%s9 + $0x9] sm:$0x1]
    %s1600 = sadd.f32 %s54, 1.0
    %v1601 = vstv %s1600
    %v1602 = vmul.f32 %v1601, %v102
    %v1603 = vmul.f32 %v1601, %v103
    %v1604 = vmul.f32 %v1601, %v104
    %v1605 = vmul.f32 %v1601, %v105
    %v1606 = vadd.f32 %v868, %v1602
    %v1607 = vadd.f32 %v871, %v1603
    %v1608 = vadd.f32 %v939, %v1604
    %v1609 = vadd.f32 %v942, %v1605
    %v1610 = vpack.c.bf16 %v1607, %v1606
    %v1611 = vpack.c.bf16 %v1609, %v1608
    %v1612 = vpack.c.bf16 %v1585, %v1584
    %v1613 = vpack.c.bf16 %v1587, %v1586
    %v1615 = vsel %vm508, %v1610, 0
    %v1618 = vsel %vm508, %v1611, 0
    %1620 = vmatprep.subr.bf16.mxu0 0
    %1621 = vmatpush1.bf16.msra.mxu0 0
    %1622 = vmatprep.subr.bf16.mxu0 0
    %1623 = vmatpush1.bf16.msra.mxu0 0
    %1624 = vmatprep.subr.bf16.mxu0 0
    %1625 = vmatpush1.bf16.msra.mxu0 0
    %1626 = vmatprep.subr.bf16.mxu0 0
    %1627 = vmatpush1.bf16.msra.mxu0 0
    %1628 = vmatprep.subr.bf16.mxu0 0
    %1629 = vmatpush1.bf16.msra.mxu0 0
    %1630 = vmatprep.subr.bf16.mxu0 0
    %1631 = vmatpush1.bf16.msra.mxu0 0
    %1632 = vmatprep.subr.bf16.mxu0 0
    %1633 = vmatpush1.bf16.msra.mxu0 %v1613
    %1634 = vmatprep.subr.bf16.mxu0 0
    %1635 = vmatpush1.bf16.msra.mxu0 %v1612
    %1636 = vmatprep.subr.bf16.mxu0 0
    %1637 = vmatpush2.bf16.msra.mxu0 0
    %1638 = vmatprep.subr.bf16.mxu0 0
    %1639 = vmatpush2.bf16.msra.mxu0 0
    %1640 = vmatprep.subr.bf16.mxu0 0
    %1641 = vmatpush2.bf16.msra.mxu0 0
    %1642 = vmatprep.subr.bf16.mxu0 0
    %1643 = vmatpush2.bf16.msra.mxu0 0
    %1644 = vmatprep.subr.bf16.mxu0 0
    %1645 = vmatpush2.bf16.msra.mxu0 0
    %1646 = vmatprep.subr.bf16.mxu0 0
    %1647 = vmatpush2.bf16.msra.mxu0 0
    %1648 = vmatprep.subr.bf16.mxu0 0
    %1649 = vmatpush2.bf16.msra.mxu0 0
    %1650 = vmatprep.subr.bf16.mxu0 0
    %1651 = vmatpush2.bf16.msra.mxu0 0
    %1652 = vmatprep.mubr.bf16.mxu0 0
    %1653 = vmatmul.mubr.bf16.gmra.mxu0 %v1615
    %v1654 = vpop.f32.mrf.mxu0
    %v1655 = vadd.f32 0.0, %v1654
    %v1656 = vpop.f32.mrf.mxu0
    %v1657 = vpop.f32.mrf.mxu0
    %v1658 = vadd.f32 0.0, %v1657
    %v1659 = vpop.f32.mrf.mxu0
    %1660 = vmatprep.mubr.bf16.mxu0 0
    %1661 = vmatmul.mubr.bf16.gmra.mxu0 %v1618
    %v1662 = vpop.f32.mrf.mxu0
    %v1663 = vadd.f32 0.0, %v1662
    %v1664 = vpop.f32.mrf.mxu0
    %v1665 = vpop.f32.mrf.mxu0
    %v1666 = vadd.f32 0.0, %v1665
    %v1667 = vpop.f32.mrf.mxu0
    %1668 = vdwg.mxu0
    %v1669 = vmul.f32 %v1655, %v76
    %v1670 = vmul.f32 %v1658, %v77
    %v1671 = vmul.f32 %v1663, %v78
    %v1672 = vmul.f32 %v1666, %v79
    %v1673 = vsel %vm515, %v1669, 0.0
    %v1674 = vsel %vm515, %v1670, 0.0
    %v1675 = vadd.f32 %v1673, %v1674
    %v1676 = vsel %vm515, %v1671, 0.0
    %v1677 = vadd.f32 %v1675, %v1676
    %v1678 = vsel %vm515, %v1672, 0.0
    %v1679 = vadd.f32 %v1677, %v1678
    %v1680 = vrot.slane %v1679, 4
    %v1681 = vadd.f32 %v1679, %v1680
    %v1682 = vrot.slane %v1681, 2
    %v1683 = vadd.f32 %v1681, %v1682
    %v1684 = vrot.slane %v1683, 1
    %v1685 = vadd.f32 %v1683, %v1684
    %v1686 = vmul.f32 %v1685, 0.1
    %v1687 = vsub.f32 %v1655, %v1686
    %v1688 = vsub.f32 %v1658, %v1686
    %v1689 = vsub.f32 %v1663, %v1686
    %v1690 = vsub.f32 %v1666, %v1686
    %v1691 = vmul.f32 %v1687, %v76
    %v1692 = vmul.f32 %v1688, %v77
    %v1693 = vmul.f32 %v1689, %v78
    %v1694 = vmul.f32 %v1690, %v79
    %v1695 = vmul.f32 %v1691, %v1691
    %v1696 = vmul.f32 %v1692, %v1692
    %v1697 = vmul.f32 %v1693, %v1693
    %v1698 = vmul.f32 %v1694, %v1694
    %v1699 = vsel %vm515, %v1695, 0.0
    %v1700 = vsel %vm515, %v1696, 0.0
    %v1701 = vadd.f32 %v1699, %v1700
    %v1702 = vsel %vm515, %v1697, 0.0
    %v1703 = vadd.f32 %v1701, %v1702
    %v1704 = vsel %vm515, %v1698, 0.0
    %v1705 = vadd.f32 %v1703, %v1704
    %v1706 = vrot.slane %v1705, 4
    %v1707 = vadd.f32 %v1705, %v1706
    %v1708 = vrot.slane %v1707, 2
    %v1709 = vadd.f32 %v1707, %v1708
    %v1710 = vrot.slane %v1709, 1
    %v1711 = vadd.f32 %v1709, %v1710
    %v1712 = vmul.f32 %v1711, 0.1
    %v1713 = vmul.f32 %v76, %v1686
    %v1714 = vmul.f32 %v77, %v1686
    %v1715 = vmul.f32 %v78, %v1686
    %v1716 = vmul.f32 %v79, %v1686
    %v1717 = vadd.f32 %v1713, 0.0
    %v1718 = vadd.f32 %v1714, 0.0
    %v1719 = vadd.f32 %v1715, 0.0
    %v1720 = vadd.f32 %v1716, 0.0
    %v1721 = vmul.f32 %v76, %v1712
    %v1722 = vmul.f32 %v77, %v1712
    %v1723 = vmul.f32 %v78, %v1712
    %v1724 = vmul.f32 %v79, %v1712
    %v1725 = vadd.f32 %v1721, 0.0
    %v1726 = vadd.f32 %v1722, 0.0
    %v1727 = vadd.f32 %v1723, 0.0
    %v1728 = vadd.f32 %v1724, 0.0
    %v1729 = vmul.f32 %v1655, %v96
    %v1730 = vmul.f32 %v1658, %v97
    %v1731 = vmul.f32 %v1663, %v98
    %v1732 = vmul.f32 %v1666, %v99
    %v1733 = vsel %vm515, %v1729, 0.0
    %v1734 = vsel %vm515, %v1730, 0.0
    %v1735 = vadd.f32 %v1733, %v1734
    %v1736 = vsel %vm515, %v1731, 0.0
    %v1737 = vadd.f32 %v1735, %v1736
    %v1738 = vsel %vm515, %v1732, 0.0
    %v1739 = vadd.f32 %v1737, %v1738
    %v1740 = vrot.slane %v1739, 4
    %v1741 = vadd.f32 %v1739, %v1740
    %v1742 = vrot.slane %v1741, 2
    %v1743 = vadd.f32 %v1741, %v1742
    %v1744 = vrot.slane %v1743, 1
    %v1745 = vadd.f32 %v1743, %v1744
    %v1746 = vmul.f32 %v1745, 0.083333336
    %v1747 = vsub.f32 %v1655, %v1746
    %v1748 = vsub.f32 %v1658, %v1746
    %v1749 = vsub.f32 %v1663, %v1746
    %v1750 = vsub.f32 %v1666, %v1746
    %v1751 = vmul.f32 %v1747, %v96
    %v1752 = vmul.f32 %v1748, %v97
    %v1753 = vmul.f32 %v1749, %v98
    %v1754 = vmul.f32 %v1750, %v99
    %v1755 = vmul.f32 %v1751, %v1751
    %v1756 = vmul.f32 %v1752, %v1752
    %v1757 = vmul.f32 %v1753, %v1753
    %v1758 = vmul.f32 %v1754, %v1754
    %v1759 = vsel %vm515, %v1755, 0.0
    %v1760 = vsel %vm515, %v1756, 0.0
    %v1761 = vadd.f32 %v1759, %v1760
    %v1762 = vsel %vm515, %v1757, 0.0
    %v1763 = vadd.f32 %v1761, %v1762
    %v1764 = vsel %vm515, %v1758, 0.0
    %v1765 = vadd.f32 %v1763, %v1764
    %v1766 = vrot.slane %v1765, 4
    %v1767 = vadd.f32 %v1765, %v1766
    %v1768 = vrot.slane %v1767, 2
    %v1769 = vadd.f32 %v1767, %v1768
    %v1770 = vrot.slane %v1769, 1
    %v1771 = vadd.f32 %v1769, %v1770
    %v1772 = vmul.f32 %v1771, 0.083333336
    %v1773 = vmul.f32 %v96, %v1746
    %v1774 = vmul.f32 %v97, %v1746
    %v1775 = vmul.f32 %v98, %v1746
    %v1776 = vmul.f32 %v99, %v1746
    %v1777 = vadd.f32 %v1717, %v1773
    %v1778 = vadd.f32 %v1718, %v1774
    %v1779 = vadd.f32 %v1719, %v1775
    %v1780 = vadd.f32 %v1720, %v1776
    %v1781 = vmul.f32 %v96, %v1772
    %v1782 = vmul.f32 %v97, %v1772
    %v1783 = vmul.f32 %v98, %v1772
    %v1784 = vmul.f32 %v99, %v1772
    %v1785 = vadd.f32 %v1725, %v1781
    %v1786 = vadd.f32 %v1726, %v1782
    %v1787 = vadd.f32 %v1727, %v1783
    %v1788 = vadd.f32 %v1728, %v1784
    %v1789 = vsub.f32 %v1655, %v1777
    %v1790 = vsub.f32 %v1658, %v1778
    %v1791 = vsub.f32 %v1663, %v1779
    %v1792 = vsub.f32 %v1666, %v1780
    %v1793 = vadd.f32 %v1785, 1e-05
    %v1794 = vadd.f32 %v1786, 1e-05
    %v1795 = vadd.f32 %v1787, 1e-05
    %v1796 = vadd.f32 %v1788, 1e-05
    %v1797 = vrsqrt.pop %v1793
    %v1798 = vrsqrt.pop %v1794
    %v1799 = vrsqrt.pop %v1795
    %v1800 = vrsqrt.pop %v1796
    %v1801 = vmul.f32 %v1789, %v1797
    %v1802 = vmul.f32 %v1790, %v1798
    %v1803 = vmul.f32 %v1791, %v1799
    %v1804 = vmul.f32 %v1792, %v1800
    %v1805 = vlaneseq
    %v1806 = vshrl.u32 %v1805, 7
    %v1807 = vsub.s32 0, %v1806
    %v1808 = vrot.slane %v1588, %v1807
    %v1809 = vmul.f32 %v1801, %v1808
    %v1810 = vmul.f32 %v1802, %v1808
    %v1811 = vmul.f32 %v1803, %v1808
    %v1812 = vmul.f32 %v1804, %v1808
    %v1813 = vlaneseq
    %v1814 = vshrl.u32 %v1813, 7
    %v1815 = vsub.s32 0, %v1814
    %v1816 = vrot.slane %v1589, %v1815
    %v1817 = vadd.f32 %v1809, %v1816
    %v1818 = vadd.f32 %v1810, %v1816
    %v1819 = vadd.f32 %v1811, %v1816
    %v1820 = vadd.f32 %v1812, %v1816
    %v1821 = vmax.f32 %v1817, 0.0
    %v1822 = vmax.f32 %v1818, 0.0
    %v1823 = vmax.f32 %v1819, 0.0
    %v1824 = vmax.f32 %v1820, 0.0
    %v1825 = vpack.c.bf16 %v1822, %v1821
    %v1826 = vpack.c.bf16 %v1824, %v1823
    %v1827 = vpack.c.bf16 %v1591, %v1590
    %v1828 = vpack.c.bf16 %v1593, %v1592
    %v1829 = vpack.c.bf16 %v1595, %v1594
    %v1830 = vpack.c.bf16 %v1597, %v1596
    %v1832 = vsel %vm515, %v1825, 0
    %v1835 = vsel %vm515, %v1826, 0
    %1837 = vmatprep.subr.bf16.mxu0 0
    %1838 = vmatpush1.bf16.msra.mxu0 0
    %1839 = vmatprep.subr.bf16.mxu0 0
    %1840 = vmatpush1.bf16.msra.mxu0 0
    %1841 = vmatprep.subr.bf16.mxu0 0
    %1842 = vmatpush1.bf16.msra.mxu0 0
    %1843 = vmatprep.subr.bf16.mxu0 0
    %1844 = vmatpush1.bf16.msra.mxu0 0
    %1845 = vmatprep.subr.bf16.mxu0 0
    %1846 = vmatpush1.bf16.msra.mxu0 %v1830
    %1847 = vmatprep.subr.bf16.mxu0 0
    %1848 = vmatpush1.bf16.msra.mxu0 %v1829
    %1849 = vmatprep.subr.bf16.mxu0 0
    %1850 = vmatpush1.bf16.msra.mxu0 %v1828
    %1851 = vmatprep.subr.bf16.mxu0 0
    %1852 = vmatpush1.bf16.msra.mxu0 %v1827
    %1853 = vmatprep.subr.bf16.mxu0 0
    %1854 = vmatpush2.bf16.msra.mxu0 0
    %1855 = vmatprep.subr.bf16.mxu0 0
    %1856 = vmatpush2.bf16.msra.mxu0 0
    %1857 = vmatprep.subr.bf16.mxu0 0
    %1858 = vmatpush2.bf16.msra.mxu0 0
    %1859 = vmatprep.subr.bf16.mxu0 0
    %1860 = vmatpush2.bf16.msra.mxu0 0
    %1861 = vmatprep.subr.bf16.mxu0 0
    %1862 = vmatpush2.bf16.msra.mxu0 0
    %1863 = vmatprep.subr.bf16.mxu0 0
    %1864 = vmatpush2.bf16.msra.mxu0 0
    %1865 = vmatprep.subr.bf16.mxu0 0
    %1866 = vmatpush2.bf16.msra.mxu0 0
    %1867 = vmatprep.subr.bf16.mxu0 0
    %1868 = vmatpush2.bf16.msra.mxu0 0
    %1869 = vmatprep.mubr.bf16.mxu0 0
    %1870 = vmatmul.mubr.bf16.gmra.mxu0 %v1832
    %v1871 = vpop.f32.mrf.mxu0
    %v1872 = vadd.f32 0.0, %v1871
    %v1873 = vpop.f32.mrf.mxu0
    %v1874 = vpop.f32.mrf.mxu0
    %v1875 = vadd.f32 0.0, %v1874
    %v1876 = vpop.f32.mrf.mxu0
    %1877 = vmatprep.mubr.bf16.mxu0 0
    %1878 = vmatmul.mubr.bf16.gmra.mxu0 %v1835
    %v1879 = vpop.f32.mrf.mxu0
    %v1880 = vadd.f32 0.0, %v1879
    %v1881 = vpop.f32.mrf.mxu0
    %v1882 = vpop.f32.mrf.mxu0
    %v1883 = vadd.f32 0.0, %v1882
    %v1884 = vpop.f32.mrf.mxu0
    %1885 = vdwg.mxu0
    %v1886 = vmul.f32 %v1872, %v76
    %v1887 = vmul.f32 %v1875, %v77
    %v1888 = vmul.f32 %v1880, %v78
    %v1889 = vmul.f32 %v1883, %v79
    %v1890 = vsel %vm508, %v1886, 0.0
    %v1891 = vsel %vm508, %v1887, 0.0
    %v1892 = vadd.f32 %v1890, %v1891
    %v1893 = vsel %vm508, %v1888, 0.0
    %v1894 = vadd.f32 %v1892, %v1893
    %v1895 = vsel %vm508, %v1889, 0.0
    %v1896 = vadd.f32 %v1894, %v1895
    %v1897 = vrot.slane %v1896, 4
    %v1898 = vadd.f32 %v1896, %v1897
    %v1899 = vrot.slane %v1898, 2
    %v1900 = vadd.f32 %v1898, %v1899
    %v1901 = vrot.slane %v1900, 1
    %v1902 = vadd.f32 %v1900, %v1901
    %v1903 = vmul.f32 %v1902, 0.1
    %v1904 = vsub.f32 %v1872, %v1903
    %v1905 = vsub.f32 %v1875, %v1903
    %v1906 = vsub.f32 %v1880, %v1903
    %v1907 = vsub.f32 %v1883, %v1903
    %v1908 = vmul.f32 %v1904, %v76
    %v1909 = vmul.f32 %v1905, %v77
    %v1910 = vmul.f32 %v1906, %v78
    %v1911 = vmul.f32 %v1907, %v79
    %v1912 = vmul.f32 %v1908, %v1908
    %v1913 = vmul.f32 %v1909, %v1909
    %v1914 = vmul.f32 %v1910, %v1910
    %v1915 = vmul.f32 %v1911, %v1911
    %v1916 = vsel %vm508, %v1912, 0.0
    %v1917 = vsel %vm508, %v1913, 0.0
    %v1918 = vadd.f32 %v1916, %v1917
    %v1919 = vsel %vm508, %v1914, 0.0
    %v1920 = vadd.f32 %v1918, %v1919
    %v1921 = vsel %vm508, %v1915, 0.0
    %v1922 = vadd.f32 %v1920, %v1921
    %v1923 = vrot.slane %v1922, 4
    %v1924 = vadd.f32 %v1922, %v1923
    %v1925 = vrot.slane %v1924, 2
    %v1926 = vadd.f32 %v1924, %v1925
    %v1927 = vrot.slane %v1926, 1
    %v1928 = vadd.f32 %v1926, %v1927
    %v1929 = vmul.f32 %v1928, 0.1
    %v1930 = vmul.f32 %v76, %v1903
    %v1931 = vmul.f32 %v77, %v1903
    %v1932 = vmul.f32 %v78, %v1903
    %v1933 = vmul.f32 %v79, %v1903
    %v1934 = vadd.f32 %v1930, 0.0
    %v1935 = vadd.f32 %v1931, 0.0
    %v1936 = vadd.f32 %v1932, 0.0
    %v1937 = vadd.f32 %v1933, 0.0
    %v1938 = vmul.f32 %v76, %v1929
    %v1939 = vmul.f32 %v77, %v1929
    %v1940 = vmul.f32 %v78, %v1929
    %v1941 = vmul.f32 %v79, %v1929
    %v1942 = vadd.f32 %v1938, 0.0
    %v1943 = vadd.f32 %v1939, 0.0
    %v1944 = vadd.f32 %v1940, 0.0
    %v1945 = vadd.f32 %v1941, 0.0
    %v1946 = vmul.f32 %v1872, %v96
    %v1947 = vmul.f32 %v1875, %v97
    %v1948 = vmul.f32 %v1880, %v98
    %v1949 = vmul.f32 %v1883, %v99
    %v1950 = vsel %vm508, %v1946, 0.0
    %v1951 = vsel %vm508, %v1947, 0.0
    %v1952 = vadd.f32 %v1950, %v1951
    %v1953 = vsel %vm508, %v1948, 0.0
    %v1954 = vadd.f32 %v1952, %v1953
    %v1955 = vsel %vm508, %v1949, 0.0
    %v1956 = vadd.f32 %v1954, %v1955
    %v1957 = vrot.slane %v1956, 4
    %v1958 = vadd.f32 %v1956, %v1957
    %v1959 = vrot.slane %v1958, 2
    %v1960 = vadd.f32 %v1958, %v1959
    %v1961 = vrot.slane %v1960, 1
    %v1962 = vadd.f32 %v1960, %v1961
    %v1963 = vmul.f32 %v1962, 0.083333336
    %v1964 = vsub.f32 %v1872, %v1963
    %v1965 = vsub.f32 %v1875, %v1963
    %v1966 = vsub.f32 %v1880, %v1963
    %v1967 = vsub.f32 %v1883, %v1963
    %v1968 = vmul.f32 %v1964, %v96
    %v1969 = vmul.f32 %v1965, %v97
    %v1970 = vmul.f32 %v1966, %v98
    %v1971 = vmul.f32 %v1967, %v99
    %v1972 = vmul.f32 %v1968, %v1968
    %v1973 = vmul.f32 %v1969, %v1969
    %v1974 = vmul.f32 %v1970, %v1970
    %v1975 = vmul.f32 %v1971, %v1971
    %v1976 = vsel %vm508, %v1972, 0.0
    %v1977 = vsel %vm508, %v1973, 0.0
    %v1978 = vadd.f32 %v1976, %v1977
    %v1979 = vsel %vm508, %v1974, 0.0
    %v1980 = vadd.f32 %v1978, %v1979
    %v1981 = vsel %vm508, %v1975, 0.0
    %v1982 = vadd.f32 %v1980, %v1981
    %v1983 = vrot.slane %v1982, 4
    %v1984 = vadd.f32 %v1982, %v1983
    %v1985 = vrot.slane %v1984, 2
    %v1986 = vadd.f32 %v1984, %v1985
    %v1987 = vrot.slane %v1986, 1
    %v1988 = vadd.f32 %v1986, %v1987
    %v1989 = vmul.f32 %v1988, 0.083333336
    %v1990 = vmul.f32 %v96, %v1963
    %v1991 = vmul.f32 %v97, %v1963
    %v1992 = vmul.f32 %v98, %v1963
    %v1993 = vmul.f32 %v99, %v1963
    %v1994 = vadd.f32 %v1934, %v1990
    %v1995 = vadd.f32 %v1935, %v1991
    %v1996 = vadd.f32 %v1936, %v1992
    %v1997 = vadd.f32 %v1937, %v1993
    %v1998 = vmul.f32 %v96, %v1989
    %v1999 = vmul.f32 %v97, %v1989
    %v2000 = vmul.f32 %v98, %v1989
    %v2001 = vmul.f32 %v99, %v1989
    %v2002 = vadd.f32 %v1942, %v1998
    %v2003 = vadd.f32 %v1943, %v1999
    %v2004 = vadd.f32 %v1944, %v2000
    %v2005 = vadd.f32 %v1945, %v2001
    %v2006 = vsub.f32 %v1872, %v1994
    %v2007 = vsub.f32 %v1875, %v1995
    %v2008 = vsub.f32 %v1880, %v1996
    %v2009 = vsub.f32 %v1883, %v1997
    %v2010 = vadd.f32 %v2002, 1e-05
    %v2011 = vadd.f32 %v2003, 1e-05
    %v2012 = vadd.f32 %v2004, 1e-05
    %v2013 = vadd.f32 %v2005, 1e-05
    %v2014 = vrsqrt.pop %v2010
    %v2015 = vrsqrt.pop %v2011
    %v2016 = vrsqrt.pop %v2012
    %v2017 = vrsqrt.pop %v2013
    %v2018 = vmul.f32 %v2006, %v2014
    %v2019 = vmul.f32 %v2007, %v2015
    %v2020 = vmul.f32 %v2008, %v2016
    %v2021 = vmul.f32 %v2009, %v2017
    %v2022 = vlaneseq
    %v2023 = vshrl.u32 %v2022, 7
    %v2024 = vsub.s32 0, %v2023
    %v2025 = vrot.slane %v1598, %v2024
    %v2026 = vmul.f32 %v2018, %v2025
    %v2027 = vmul.f32 %v2019, %v2025
    %v2028 = vmul.f32 %v2020, %v2025
    %v2029 = vmul.f32 %v2021, %v2025
    %v2030 = vlaneseq
    %v2031 = vshrl.u32 %v2030, 7
    %v2032 = vsub.s32 0, %v2031
    %v2033 = vrot.slane %v1599, %v2032
    %v2034 = vadd.f32 %v2026, %v2033
    %v2035 = vadd.f32 %v2027, %v2033
    %v2036 = vadd.f32 %v2028, %v2033
    %v2037 = vadd.f32 %v2029, %v2033
    %v2038 = vmax.f32 %v2034, 0.0
    %v2039 = vmax.f32 %v2035, 0.0
    %v2040 = vmax.f32 %v2036, 0.0
    %v2041 = vmax.f32 %v2037, 0.0
    %v2042 = vadd.f32 %v102, %v2038
    %v2043 = vadd.f32 %v103, %v2039
    %v2044 = vadd.f32 %v104, %v2040
    %v2045 = vadd.f32 %v105, %v2041
    %2046 = vst.msk [vmem:[%s11 + $0x10] sm:$0xff] %vm508, %v2042
    %2047 = vst.msk [vmem:[%s11 + $0x18] sm:$0xff] %vm508, %v2043
    %2048 = vst.msk [vmem:[%s11 + $0x20] sm:$0xff] %vm508, %v2044
    %2049 = vst.msk [vmem:[%s11 + $0x28] sm:$0xff] %vm508, %v2045
    // Predicated region
    $region50: #{conv_layer_forward.1} parent=1 // pred_check
      _
    $region51: #{conv_layer_forward.1} parent=1 // pred_check_branch
      %2051 = sbr.rel (0) target = $region53
    $region52: #{conv_layer_forward.1} parent=1 // pred_region
      _
    $region53: #{conv_layer_forward.1} parent=1 // pred_fallthru
      _
    // Predicated region
    $region54: #{conv_layer_forward.1} parent=1 // pred_check
      _
    $region55: #{conv_layer_forward.1} parent=1 // pred_check_branch
      %2053 = sbr.rel (0) target = $region57
    $region56: #{conv_layer_forward.1} parent=1 // pred_region
      _
    $region57: #{conv_layer_forward.1} parent=1 // pred_fallthru
      _
    %2054 = vsyncpa [#allocation3], 1

</llo_original>
